<compile_context>
chip_gen: v6e
topology: v6e:2x2x1
jax: 0.10.0
libtpu: 0.0.40
codegen_flags: <defaults>
</compile_context>

<pallas_src>
import jax
import jax.numpy as jnp
from jax import lax
from jax.experimental import pallas as pl
from jax.experimental.pallas import tpu as pltpu

B = 2              # batch
S = 16             # args.max_length
D = 64             # args.bert_dim
H = D // 2         # hidden_dim
P = 4              # args.polarities_dim
SYN_LAYERS = 2     # args.syn_layers (fusion assumes == args.sem_layers == 2)
SEM_LAYERS = 2
LN_EPS = 1e-5
BS = B * S         # flattened (batch * seq) rows
OUT_W = 128        # packed bias / output lane width (== 2 * D)

assert 2 * D == OUT_W and 2 * H == D and SYN_LAYERS == SEM_LAYERS == 2


def _batch_of(idx):
    """Integer divide an i32 iota by S (bit-shift when S is a power of two)."""
    if S & (S - 1) == 0:
        return idx >> (S.bit_length() - 1)
    return idx // S


def _local_of(idx):
    if S & (S - 1) == 0:
        return idx & (S - 1)
    return idx % S


def dagcn_kernel(seq_ref, adj_ref, srcm_ref, pool_ref,
                 gcn_w0_ref, gcn_w1_ref, wproj_ref, aff_w_ref,
                 affmap_w_ref, out_w_ref, bias_ref, out_ref):
    f32 = jnp.float32
    x = seq_ref[...]                                   # [BS, D]
    adj = adj_ref[...]                                 # [BS, BS] block-diagonal

    # Packed bias slab rows.
    ln_g = bias_ref[0:1, :D]                           # [1, D]
    ln_b = bias_ref[1:2, :D]
    gcn_b0 = bias_ref[2:3, :]                          # [1, 2D]
    gcn_b1 = bias_ref[3:4, :]                          # [1, 2D]
    proj_b = bias_ref[4:5, :2 * H]                     # [1, 2H]
    affmap_b = bias_ref[5:6, :H]                       # [1, H]
    out_b = bias_ref[6:7, :]                           # [1, OUT_W]

    # --- LayerNorm(bert_dim); bert/pooled/affine dropout = identity (eval) ----
    mu = jnp.mean(x, axis=-1, keepdims=True)
    var = jnp.mean((x - mu) ** 2, axis=-1, keepdims=True)
    gcn_inputs = (x - mu) * lax.rsqrt(var + LN_EPS) * ln_g + ln_b

    # --- inputs = cat(gcn_inputs[:, 1:, :] * src_mask[:, :-1, None], zeros) ---
    # Sublane rotation by one row + per-sentence "drop last row" mask (the roll
    # wraps across sentence boundaries, but those rows are zeroed by `keep`).
    rolled = pltpu.roll(gcn_inputs, shift=BS - 1, axis=0)        # row i <- row i+1
    row = lax.broadcasted_iota(jnp.int32, (BS, 1), 0)
    keep = jnp.where(_local_of(row) == (S - 1), 0.0, 1.0).astype(f32)
    inputs = rolled * srcm_ref[...] * keep                       # [BS, D]

    # Degree normalisation shared by both GCN channels.
    deg = jnp.sum(adj, axis=-1, keepdims=True) + 1.0
    inv_deg = pl.reciprocal(deg, approx=True)                    # [BS, 1]

    # --- fused dual-channel GCN (syn | sem lane-concatenated) -----------------
    # TODO(synk): SyntacticGCN / SemanticGCN sources are not provided; a
    # degree-normalised GCN stack relu((A @ h @ W + b) / deg) drives both
    # channels (same math as before, now fused into 128-lane matmuls).
    ax0 = jnp.dot(adj, inputs, preferred_element_type=f32)               # [BS, D]
    h = jnp.maximum(
        (jnp.dot(ax0, gcn_w0_ref[...], preferred_element_type=f32) + gcn_b0)
        * inv_deg, 0.0)                                                  # [BS, 2D]
    ax1 = jnp.dot(adj, h, preferred_element_type=f32)                    # [BS, 2D]
    h = jnp.maximum(
        (jnp.dot(ax1, gcn_w1_ref[...], preferred_element_type=f32) + gcn_b1)
        * inv_deg, 0.0)                                                  # [BS, 2D]

    # --- Wsyn / Wsem as one block-diagonal projection, relu -------------------
    proj = jnp.maximum(
        jnp.dot(h, wproj_ref[...], preferred_element_type=f32) + proj_b,
        0.0)                                                             # [BS, 2H]
    syn_out = proj[:, :H]
    sem_out = proj[:, H:]

    # --- output_merge == 'biaffine' (per-sentence via batch-block masking) ----
    aff = jnp.dot(proj, aff_w_ref[...], preferred_element_type=f32)      # [BS, 2H]
    dn = (((1,), (1,)), ((), ()))                                        # contract H, no .T
    s1 = lax.dot_general(aff[:, :H], sem_out, dn, preferred_element_type=f32)  # [BS, BS]
    s2 = lax.dot_general(aff[:, H:], syn_out, dn, preferred_element_type=f32)  # [BS, BS]

    ri = lax.broadcasted_iota(jnp.int32, (BS, BS), 0)
    ci = lax.broadcasted_iota(jnp.int32, (BS, BS), 1)
    block_bias = jnp.where(_batch_of(ri) == _batch_of(ci), 0.0, -1e30).astype(f32)

    def softmax_last(s):
        s = s + block_bias                       # cross-sentence attention -> 0
        m = jnp.max(s, axis=-1, keepdims=True)
        e = jnp.exp(s - m)
        return e * pl.reciprocal(jnp.sum(e, axis=-1, keepdims=True), approx=True)

    g_dep = jnp.dot(softmax_last(s1), sem_out, preferred_element_type=f32)   # [BS, H]
    g_ag = jnp.dot(softmax_last(s2), syn_out, preferred_element_type=f32)    # [BS, H]
    g_cat = jnp.concatenate([g_dep, g_ag], axis=-1)                          # [BS, 2H]

    # --- aspect-masked mean pooling as a matmul (MXU, not sublane reduce) -----
    pool = pool_ref[...]                                                     # [B, BS]
    inv_wn = pl.reciprocal(jnp.sum(pool, axis=-1, keepdims=True), approx=True)
    pooled = jnp.dot(pool, g_cat, preferred_element_type=f32) * inv_wn       # [B, 2H]

    # outputs = relu(affine_map(cat([dep, ag], -1)))
    hidden = jnp.maximum(
        jnp.dot(pooled, affmap_w_ref[...], preferred_element_type=f32) + affmap_b,
        0.0)                                                                 # [B, H]

    # Single lane-dense output slab: lanes [0, H) = hidden, [H, H+P) = logits.
    # out_w = [I_H | classifier_W | 0], out_b = [0 | classifier_b | 0].
    out_ref[...] = (jnp.dot(hidden, out_w_ref[...], preferred_element_type=f32)
                    + out_b)                                                 # [B, OUT_W]


def _pack_params(p):
    """Host-side layout plumbing: pack the small weights into lane-aligned slabs."""
    f32 = jnp.float32
    zDD = jnp.zeros((D, D), f32)
    zDH = jnp.zeros((D, H), f32)
    zHH = jnp.zeros((H, H), f32)

    gcn_w0 = jnp.concatenate([p["syn_w"][0], p["sem_w"][0]], axis=1)          # [D, 2D]
    gcn_w1 = jnp.concatenate(
        [jnp.concatenate([p["syn_w"][1], zDD], axis=1),
         jnp.concatenate([zDD, p["sem_w"][1]], axis=1)], axis=0)              # [2D, 2D]
    wproj = jnp.concatenate(
        [jnp.concatenate([p["wsyn"], zDH], axis=1),
         jnp.concatenate([zDH, p["wsem"]], axis=1)], axis=0)                  # [2D, 2H]
    aff_w = jnp.concatenate(
        [jnp.concatenate([p["aff1"], zHH], axis=1),
         jnp.concatenate([zHH, p["aff2"]], axis=1)], axis=0)                  # [2H, 2H]
    affmap_w = p["affmap_w"]                                                  # [2H, H]
    out_w = jnp.concatenate(
        [jnp.eye(H, dtype=f32), p["cls_w"],
         jnp.zeros((H, OUT_W - H - P), f32)], axis=1)                         # [H, 128]

    def row(v):
        v = jnp.asarray(v, f32).reshape(1, -1)
        return jnp.pad(v, ((0, 0), (0, OUT_W - v.shape[1])))

    bias_slab = jnp.concatenate([
        row(p["ln_g"]), row(p["ln_b"]),
        row(jnp.concatenate([p["syn_b"][0], p["sem_b"][0]])),                 # [1, 2D]
        row(jnp.concatenate([p["syn_b"][1], p["sem_b"][1]])),                 # [1, 2D]
        row(jnp.concatenate([p["bsyn"], p["bsem"]])),                         # [1, 2H] -> pad
        row(p["affmap_b"]),                                                   # [1, H]  -> pad
        row(jnp.concatenate([jnp.zeros((H,), f32), p["cls_b"]])),             # out bias
        jnp.zeros((1, OUT_W), f32),
    ], axis=0)                                                                # [8, 128]
    return gcn_w0, gcn_w1, wproj, aff_w, affmap_w, out_w, bias_slab


@jax.jit
def dagcn_bert_forward(seq, adj, src_mask, aspect_mask, params):
    f32 = jnp.float32
    eyeB = jnp.eye(B, dtype=f32)

    # Layout plumbing: flatten the batch, block-diagonalise the adjacency and
    # turn the aspect mask into a per-sentence pooling matrix.
    seq_flat = seq.astype(f32).reshape(BS, D)
    adj_bd = jnp.einsum("bc,bij->bicj", eyeB, adj.astype(f32)).reshape(BS, BS)
    srcm_flat = src_mask.astype(f32).reshape(BS, 1)
    pool_mat = jnp.einsum("bc,bs->bcs", eyeB, aspect_mask.astype(f32)).reshape(B, BS)

    packed = _pack_params(params)

    def full(shape):
        return pl.BlockSpec(shape, lambda i, _s=shape: (0,) * len(_s))

    in_specs = [
        full((BS, D)),            # flattened sequence_output
        full((BS, BS)),           # block-diagonal dep_adj
        full((BS, 1)),            # flattened src_mask
        full((B, BS)),            # aspect pooling matrix
        full((D, 2 * D)),         # lane-stacked GCN layer-0 weight
        full((2 * D, 2 * D)),     # block-diag GCN layer-1 weight
        full((2 * D, 2 * H)),     # block-diag Wsyn | Wsem
        full((2 * H, 2 * H)),     # block-diag affine1 | affine2
        full((2 * H, H)),         # affine_map weight
        full((H, OUT_W)),         # [identity | classifier_W | 0]
        full((8, OUT_W)),         # packed bias slab
    ]

    slab = pl.pallas_call(
        dagcn_kernel,
        out_shape=jax.ShapeDtypeStruct((B, OUT_W), f32),
        grid_spec=pltpu.PrefetchScalarGridSpec(
            num_scalar_prefetch=0,
            grid=(1,),                       # batch fully collapsed into one program
            in_specs=in_specs,
            out_specs=full((B, OUT_W)),
        ),
        compiler_params=pltpu.CompilerParams(dimension_semantics=("arbitrary",)),
    )(seq_flat, adj_bd, srcm_flat, pool_mat, *packed)

    hiddens = slab[:, :H]
    logits = slab[:, H:H + P]
    return logits, hiddens


if __name__ == "__main__":
    key = jax.random.PRNGKey(0)
    ks = jax.random.split(key, 20)

    # TODO(synk): the external BERT encoder and the host-side head_to_adj graph
    # construction (Python dicts / numpy) have no Pallas equivalent; the BERT
    # sequence output and dependency adjacency are synthesized deterministically.
    seq = jax.random.normal(ks[0], (B, S, D), jnp.float32)
    adj = (jax.random.uniform(ks[1], (B, S, S)) < 0.3).astype(jnp.float32)
    adj = jnp.maximum(adj, jnp.transpose(adj, (0, 2, 1)))        # undirected graph

    lengths = jnp.array([10, 12], jnp.int32)
    pos = jnp.arange(S)[None, :]
    src_mask = (pos < lengths[:, None]).astype(jnp.float32)                       # [B, S]
    aspect_mask = jnp.broadcast_to(
        ((pos >= 2) & (pos <= 3)).astype(jnp.float32), (B, S))                     # [B, S]

    def w(k, shape, scale=0.08):
        return jax.random.normal(k, shape, jnp.float32) * scale

    params = dict(
        ln_g=jnp.ones((D,), jnp.float32), ln_b=jnp.zeros((D,), jnp.float32),
        syn_w=w(ks[2], (SYN_LAYERS, D, D)), syn_b=w(ks[3], (SYN_LAYERS, D)),
        sem_w=w(ks[4], (SEM_LAYERS, D, D)), sem_b=w(ks[5], (SEM_LAYERS, D)),
        wsyn=w(ks[6], (D, H)), bsyn=w(ks[7], (H,)),
        wsem=w(ks[8], (D, H)), bsem=w(ks[9], (H,)),
        aff1=w(ks[10], (H, H)), aff2=w(ks[11], (H, H)),
        affmap_w=w(ks[12], (2 * H, H)), affmap_b=w(ks[13], (H,)),
        cls_w=w(ks[14], (H, P)), cls_b=w(ks[15], (P,)),
    )

    logits, hiddens = dagcn_bert_forward(seq, adj, src_mask, aspect_mask, params)
    jax.block_until_ready((logits, hiddens))

    assert logits.shape == (B, P) and hiddens.shape == (B, H)
    assert bool(jnp.all(jnp.isfinite(logits))) and bool(jnp.all(jnp.isfinite(hiddens)))
    print("KERNEL_OK")
</pallas_src>

<mosaic_0001>
module attributes {stable_mosaic.version = 11 : i64} {
  func.func @dagcn_kernel(%arg0: i32, %arg1: memref<32x64xf32, #tpu.memory_space<vmem>>, %arg2: memref<32x32xf32, #tpu.memory_space<vmem>>, %arg3: memref<32x1xf32, #tpu.memory_space<vmem>>, %arg4: memref<2x32xf32, #tpu.memory_space<vmem>>, %arg5: memref<64x128xf32, #tpu.memory_space<vmem>>, %arg6: memref<128x128xf32, #tpu.memory_space<vmem>>, %arg7: memref<128x64xf32, #tpu.memory_space<vmem>>, %arg8: memref<64x64xf32, #tpu.memory_space<vmem>>, %arg9: memref<64x32xf32, #tpu.memory_space<vmem>>, %arg10: memref<32x128xf32, #tpu.memory_space<vmem>>, %arg11: memref<8x128xf32, #tpu.memory_space<vmem>>, %arg12: memref<2x128xf32, #tpu.memory_space<vmem>>) attributes {dimension_semantics = [#tpu.dimension_semantics<arbitrary>], iteration_bounds = array<i64: 1>, scalar_prefetch = 0 : i64, scratch_operands = 0 : i64, tpu.core_type = #tpu.core_type<tc>, window_params = [{pipeline_mode = #tpu.pipeline_mode<synchronous>, transform_indices = @transform_0, window_bounds = array<i64: 32, 64>}, {pipeline_mode = #tpu.pipeline_mode<synchronous>, transform_indices = @transform_1, window_bounds = array<i64: 32, 32>}, {pipeline_mode = #tpu.pipeline_mode<synchronous>, transform_indices = @transform_2, window_bounds = array<i64: 32, 1>}, {pipeline_mode = #tpu.pipeline_mode<synchronous>, transform_indices = @transform_3, window_bounds = array<i64: 2, 32>}, {pipeline_mode = #tpu.pipeline_mode<synchronous>, transform_indices = @transform_4, window_bounds = array<i64: 64, 128>}, {pipeline_mode = #tpu.pipeline_mode<synchronous>, transform_indices = @transform_5, window_bounds = array<i64: 128, 128>}, {pipeline_mode = #tpu.pipeline_mode<synchronous>, transform_indices = @transform_6, window_bounds = array<i64: 128, 64>}, {pipeline_mode = #tpu.pipeline_mode<synchronous>, transform_indices = @transform_7, window_bounds = array<i64: 64, 64>}, {pipeline_mode = #tpu.pipeline_mode<synchronous>, transform_indices = @transform_8, window_bounds = array<i64: 64, 32>}, {pipeline_mode = #tpu.pipeline_mode<synchronous>, transform_indices = @transform_9, window_bounds = array<i64: 32, 128>}, {pipeline_mode = #tpu.pipeline_mode<synchronous>, transform_indices = @transform_10, window_bounds = array<i64: 8, 128>}, {pipeline_mode = #tpu.pipeline_mode<synchronous>, transform_indices = @transform_11, window_bounds = array<i64: 2, 128>}]} {
    %c0 = arith.constant 0 : index
    %c0_0 = arith.constant 0 : index
    %0 = vector.load %arg1[%c0, %c0_0] : memref<32x64xf32, #tpu.memory_space<vmem>>, vector<32x64xf32>
    %c0_1 = arith.constant 0 : index
    %c0_2 = arith.constant 0 : index
    %1 = vector.load %arg2[%c0_1, %c0_2] : memref<32x32xf32, #tpu.memory_space<vmem>>, vector<32x32xf32>
    %c0_3 = arith.constant 0 : index
    %c0_4 = arith.constant 0 : index
    %2 = vector.load %arg11[%c0_3, %c0_4] : memref<8x128xf32, #tpu.memory_space<vmem>>, vector<1x64xf32>
    %c1 = arith.constant 1 : index
    %c0_5 = arith.constant 0 : index
    %3 = vector.load %arg11[%c1, %c0_5] : memref<8x128xf32, #tpu.memory_space<vmem>>, vector<1x64xf32>
    %c2 = arith.constant 2 : index
    %c0_6 = arith.constant 0 : index
    %4 = vector.load %arg11[%c2, %c0_6] : memref<8x128xf32, #tpu.memory_space<vmem>>, vector<1x128xf32>
    %c3 = arith.constant 3 : index
    %c0_7 = arith.constant 0 : index
    %5 = vector.load %arg11[%c3, %c0_7] : memref<8x128xf32, #tpu.memory_space<vmem>>, vector<1x128xf32>
    %c4 = arith.constant 4 : index
    %c0_8 = arith.constant 0 : index
    %6 = vector.load %arg11[%c4, %c0_8] : memref<8x128xf32, #tpu.memory_space<vmem>>, vector<1x64xf32>
    %c5 = arith.constant 5 : index
    %c0_9 = arith.constant 0 : index
    %7 = vector.load %arg11[%c5, %c0_9] : memref<8x128xf32, #tpu.memory_space<vmem>>, vector<1x32xf32>
    %c6 = arith.constant 6 : index
    %c0_10 = arith.constant 0 : index
    %8 = vector.load %arg11[%c6, %c0_10] : memref<8x128xf32, #tpu.memory_space<vmem>>, vector<1x128xf32>
    %cst = arith.constant dense<0.000000e+00> : vector<32xf32>
    %9 = vector.multi_reduction <add>, %0, %cst [1] : vector<32x64xf32> to vector<32xf32>
    %10 = vector.shape_cast %9 : vector<32xf32> to vector<32x1xf32>
    %cst_11 = arith.constant 6.400000e+01 : f32
    %11 = vector.broadcast %cst_11 : f32 to vector<32x1xf32>
    %12 = arith.divf %10, %11 : vector<32x1xf32>
    %13 = vector.broadcast %12 : vector<32x1xf32> to vector<32x64xf32>
    %14 = arith.subf %0, %13 : vector<32x64xf32>
    %15 = arith.mulf %14, %14 : vector<32x64xf32>
    %cst_12 = arith.constant dense<0.000000e+00> : vector<32xf32>
    %16 = vector.multi_reduction <add>, %15, %cst_12 [1] : vector<32x64xf32> to vector<32xf32>
    %17 = vector.shape_cast %16 : vector<32xf32> to vector<32x1xf32>
    %cst_13 = arith.constant 6.400000e+01 : f32
    %18 = vector.broadcast %cst_13 : f32 to vector<32x1xf32>
    %19 = arith.divf %17, %18 : vector<32x1xf32>
    %20 = vector.broadcast %12 : vector<32x1xf32> to vector<32x64xf32>
    %21 = arith.subf %0, %20 : vector<32x64xf32>
    %cst_14 = arith.constant 9.99999974E-6 : f32
    %22 = vector.broadcast %cst_14 : f32 to vector<32x1xf32>
    %23 = arith.addf %19, %22 : vector<32x1xf32>
    %24 = math.rsqrt %23 : vector<32x1xf32>
    %25 = vector.broadcast %24 : vector<32x1xf32> to vector<32x64xf32>
    %26 = arith.mulf %21, %25 : vector<32x64xf32>
    %27 = vector.broadcast %2 : vector<1x64xf32> to vector<32x64xf32>
    %28 = arith.mulf %26, %27 : vector<32x64xf32>
    %29 = vector.broadcast %3 : vector<1x64xf32> to vector<32x64xf32>
    %30 = arith.addf %28, %29 : vector<32x64xf32>
    %c31_i32 = arith.constant 31 : i32
    %31 = tpu.dynamic_rotate %30 by %c31_i32 dim 0 : vector<32x64xf32>, i32 -> vector<32x64xf32>
    %32 = tpu.iota {dimensions = array<i32: 0>} : vector<32x1xi32>
    %c15_i32 = arith.constant 15 : i32
    %33 = vector.broadcast %c15_i32 : i32 to vector<32x1xi32>
    %34 = arith.andi %32, %33 : vector<32x1xi32>
    %c15_i32_15 = arith.constant 15 : i32
    %35 = vector.broadcast %c15_i32_15 : i32 to vector<32x1xi32>
    %36 = arith.cmpi eq, %34, %35 : vector<32x1xi32>
    %cst_16 = arith.constant 0.000000e+00 : f32
    %cst_17 = arith.constant 1.000000e+00 : f32
    %37 = vector.broadcast %cst_16 : f32 to vector<32x1xf32>
    %38 = vector.broadcast %cst_17 : f32 to vector<32x1xf32>
    %39 = arith.select %36, %37, %38 : vector<32x1xi1>, vector<32x1xf32>
    %c0_18 = arith.constant 0 : index
    %c0_19 = arith.constant 0 : index
    %40 = vector.load %arg3[%c0_18, %c0_19] : memref<32x1xf32, #tpu.memory_space<vmem>>, vector<32x1xf32>
    %41 = vector.broadcast %40 : vector<32x1xf32> to vector<32x64xf32>
    %42 = arith.mulf %31, %41 : vector<32x64xf32>
    %43 = vector.broadcast %39 : vector<32x1xf32> to vector<32x64xf32>
    %44 = arith.mulf %42, %43 : vector<32x64xf32>
    %cst_20 = arith.constant dense<0.000000e+00> : vector<32xf32>
    %45 = vector.multi_reduction <add>, %1, %cst_20 [1] : vector<32x32xf32> to vector<32xf32>
    %46 = vector.shape_cast %45 : vector<32xf32> to vector<32x1xf32>
    %cst_21 = arith.constant 1.000000e+00 : f32
    %47 = vector.broadcast %cst_21 : f32 to vector<32x1xf32>
    %48 = arith.addf %46, %47 : vector<32x1xf32>
    %49 = tpu.reciprocal %48 {approx = true} : vector<32x1xf32> -> vector<32x1xf32>
    %cst_22 = arith.constant dense<0.000000e+00> : vector<32x64xf32>
    %50 = tpu.matmul %1, %44, %cst_22 {dimension_numbers = #tpu.dot_dimension_numbers<[1], [0], [0], [1], [0, 0, 1, 1], [], []>} : vector<32x32xf32>, vector<32x64xf32>, vector<32x64xf32> -> vector<32x64xf32>
    %c0_23 = arith.constant 0 : index
    %c0_24 = arith.constant 0 : index
    %51 = vector.load %arg5[%c0_23, %c0_24] : memref<64x128xf32, #tpu.memory_space<vmem>>, vector<64x128xf32>
    %cst_25 = arith.constant dense<0.000000e+00> : vector<32x128xf32>
    %52 = tpu.matmul %50, %51, %cst_25 {dimension_numbers = #tpu.dot_dimension_numbers<[1], [0], [0], [1], [0, 0, 1, 1], [], []>} : vector<32x64xf32>, vector<64x128xf32>, vector<32x128xf32> -> vector<32x128xf32>
    %53 = vector.broadcast %4 : vector<1x128xf32> to vector<32x128xf32>
    %54 = arith.addf %52, %53 : vector<32x128xf32>
    %55 = vector.broadcast %49 : vector<32x1xf32> to vector<32x128xf32>
    %56 = arith.mulf %54, %55 : vector<32x128xf32>
    %cst_26 = arith.constant 0.000000e+00 : f32
    %57 = vector.broadcast %cst_26 : f32 to vector<32x128xf32>
    %58 = arith.maximumf %56, %57 : vector<32x128xf32>
    %cst_27 = arith.constant dense<0.000000e+00> : vector<32x128xf32>
    %59 = tpu.matmul %1, %58, %cst_27 {dimension_numbers = #tpu.dot_dimension_numbers<[1], [0], [0], [1], [0, 0, 1, 1], [], []>} : vector<32x32xf32>, vector<32x128xf32>, vector<32x128xf32> -> vector<32x128xf32>
    %c0_28 = arith.constant 0 : index
    %c0_29 = arith.constant 0 : index
    %60 = vector.load %arg6[%c0_28, %c0_29] : memref<128x128xf32, #tpu.memory_space<vmem>>, vector<128x128xf32>
    %cst_30 = arith.constant dense<0.000000e+00> : vector<32x128xf32>
    %61 = tpu.matmul %59, %60, %cst_30 {dimension_numbers = #tpu.dot_dimension_numbers<[1], [0], [0], [1], [0, 0, 1, 1], [], []>} : vector<32x128xf32>, vector<128x128xf32>, vector<32x128xf32> -> vector<32x128xf32>
    %62 = vector.broadcast %5 : vector<1x128xf32> to vector<32x128xf32>
    %63 = arith.addf %61, %62 : vector<32x128xf32>
    %64 = vector.broadcast %49 : vector<32x1xf32> to vector<32x128xf32>
    %65 = arith.mulf %63, %64 : vector<32x128xf32>
    %cst_31 = arith.constant 0.000000e+00 : f32
    %66 = vector.broadcast %cst_31 : f32 to vector<32x128xf32>
    %67 = arith.maximumf %65, %66 : vector<32x128xf32>
    %c0_32 = arith.constant 0 : index
    %c0_33 = arith.constant 0 : index
    %68 = vector.load %arg7[%c0_32, %c0_33] : memref<128x64xf32, #tpu.memory_space<vmem>>, vector<128x64xf32>
    %cst_34 = arith.constant dense<0.000000e+00> : vector<32x64xf32>
    %69 = tpu.matmul %67, %68, %cst_34 {dimension_numbers = #tpu.dot_dimension_numbers<[1], [0], [0], [1], [0, 0, 1, 1], [], []>} : vector<32x128xf32>, vector<128x64xf32>, vector<32x64xf32> -> vector<32x64xf32>
    %70 = vector.broadcast %6 : vector<1x64xf32> to vector<32x64xf32>
    %71 = arith.addf %69, %70 : vector<32x64xf32>
    %cst_35 = arith.constant 0.000000e+00 : f32
    %72 = vector.broadcast %cst_35 : f32 to vector<32x64xf32>
    %73 = arith.maximumf %71, %72 : vector<32x64xf32>
    %74 = vector.extract_strided_slice %73 {offsets = [0, 0], sizes = [32, 32], strides = [1, 1]} : vector<32x64xf32> to vector<32x32xf32>
    %75 = vector.extract_strided_slice %73 {offsets = [0, 32], sizes = [32, 32], strides = [1, 1]} : vector<32x64xf32> to vector<32x32xf32>
    %c0_36 = arith.constant 0 : index
    %c0_37 = arith.constant 0 : index
    %76 = vector.load %arg8[%c0_36, %c0_37] : memref<64x64xf32, #tpu.memory_space<vmem>>, vector<64x64xf32>
    %cst_38 = arith.constant dense<0.000000e+00> : vector<32x64xf32>
    %77 = tpu.matmul %73, %76, %cst_38 {dimension_numbers = #tpu.dot_dimension_numbers<[1], [0], [0], [1], [0, 0, 1, 1], [], []>} : vector<32x64xf32>, vector<64x64xf32>, vector<32x64xf32> -> vector<32x64xf32>
    %78 = vector.extract_strided_slice %77 {offsets = [0, 0], sizes = [32, 32], strides = [1, 1]} : vector<32x64xf32> to vector<32x32xf32>
    %cst_39 = arith.constant dense<0.000000e+00> : vector<32x32xf32>
    %79 = tpu.matmul %78, %75, %cst_39 {dimension_numbers = #tpu.dot_dimension_numbers<[1], [1], [0], [0], [0, 0, 1, 0], [], []>} : vector<32x32xf32>, vector<32x32xf32>, vector<32x32xf32> -> vector<32x32xf32>
    %80 = vector.extract_strided_slice %77 {offsets = [0, 32], sizes = [32, 32], strides = [1, 1]} : vector<32x64xf32> to vector<32x32xf32>
    %cst_40 = arith.constant dense<0.000000e+00> : vector<32x32xf32>
    %81 = tpu.matmul %80, %74, %cst_40 {dimension_numbers = #tpu.dot_dimension_numbers<[1], [1], [0], [0], [0, 0, 1, 0], [], []>} : vector<32x32xf32>, vector<32x32xf32>, vector<32x32xf32> -> vector<32x32xf32>
    %82 = tpu.iota {dimensions = array<i32: 0>} : vector<32x32xi32>
    %83 = tpu.iota {dimensions = array<i32: 1>} : vector<32x32xi32>
    %c4_i32 = arith.constant 4 : i32
    %84 = vector.broadcast %c4_i32 : i32 to vector<32x32xi32>
    %85 = arith.shrsi %82, %84 : vector<32x32xi32>
    %c4_i32_41 = arith.constant 4 : i32
    %86 = vector.broadcast %c4_i32_41 : i32 to vector<32x32xi32>
    %87 = arith.shrsi %83, %86 : vector<32x32xi32>
    %88 = arith.cmpi eq, %85, %87 : vector<32x32xi32>
    %cst_42 = arith.constant 0.000000e+00 : f32
    %cst_43 = arith.constant -1.000000e+30 : f32
    %89 = vector.broadcast %cst_42 : f32 to vector<32x32xf32>
    %90 = vector.broadcast %cst_43 : f32 to vector<32x32xf32>
    %91 = arith.select %88, %89, %90 : vector<32x32xi1>, vector<32x32xf32>
    %92 = arith.addf %79, %91 : vector<32x32xf32>
    %cst_44 = arith.constant dense<0xFF800000> : vector<32xf32>
    %93 = vector.multi_reduction <maximumf>, %92, %cst_44 [1] : vector<32x32xf32> to vector<32xf32>
    %94 = vector.shape_cast %93 : vector<32xf32> to vector<32x1xf32>
    %95 = vector.broadcast %94 : vector<32x1xf32> to vector<32x32xf32>
    %96 = arith.subf %92, %95 : vector<32x32xf32>
    %97 = math.exp %96 : vector<32x32xf32>
    %cst_45 = arith.constant dense<0.000000e+00> : vector<32xf32>
    %98 = vector.multi_reduction <add>, %97, %cst_45 [1] : vector<32x32xf32> to vector<32xf32>
    %99 = vector.shape_cast %98 : vector<32xf32> to vector<32x1xf32>
    %100 = tpu.reciprocal %99 {approx = true} : vector<32x1xf32> -> vector<32x1xf32>
    %101 = vector.broadcast %100 : vector<32x1xf32> to vector<32x32xf32>
    %102 = arith.mulf %97, %101 : vector<32x32xf32>
    %cst_46 = arith.constant dense<0.000000e+00> : vector<32x32xf32>
    %103 = tpu.matmul %102, %75, %cst_46 {dimension_numbers = #tpu.dot_dimension_numbers<[1], [0], [0], [1], [0, 0, 1, 1], [], []>} : vector<32x32xf32>, vector<32x32xf32>, vector<32x32xf32> -> vector<32x32xf32>
    %104 = arith.addf %81, %91 : vector<32x32xf32>
    %cst_47 = arith.constant dense<0xFF800000> : vector<32xf32>
    %105 = vector.multi_reduction <maximumf>, %104, %cst_47 [1] : vector<32x32xf32> to vector<32xf32>
    %106 = vector.shape_cast %105 : vector<32xf32> to vector<32x1xf32>
    %107 = vector.broadcast %106 : vector<32x1xf32> to vector<32x32xf32>
    %108 = arith.subf %104, %107 : vector<32x32xf32>
    %109 = math.exp %108 : vector<32x32xf32>
    %cst_48 = arith.constant dense<0.000000e+00> : vector<32xf32>
    %110 = vector.multi_reduction <add>, %109, %cst_48 [1] : vector<32x32xf32> to vector<32xf32>
    %111 = vector.shape_cast %110 : vector<32xf32> to vector<32x1xf32>
    %112 = tpu.reciprocal %111 {approx = true} : vector<32x1xf32> -> vector<32x1xf32>
    %113 = vector.broadcast %112 : vector<32x1xf32> to vector<32x32xf32>
    %114 = arith.mulf %109, %113 : vector<32x32xf32>
    %cst_49 = arith.constant dense<0.000000e+00> : vector<32x32xf32>
    %115 = tpu.matmul %114, %74, %cst_49 {dimension_numbers = #tpu.dot_dimension_numbers<[1], [0], [0], [1], [0, 0, 1, 1], [], []>} : vector<32x32xf32>, vector<32x32xf32>, vector<32x32xf32> -> vector<32x32xf32>
    %116 = tpu.concatenate %103, %115 in 1 : vector<32x32xf32>, vector<32x32xf32> -> vector<32x64xf32>
    %c0_50 = arith.constant 0 : index
    %c0_51 = arith.constant 0 : index
    %117 = vector.load %arg4[%c0_50, %c0_51] : memref<2x32xf32, #tpu.memory_space<vmem>>, vector<2x32xf32>
    %cst_52 = arith.constant dense<0.000000e+00> : vector<2xf32>
    %118 = vector.multi_reduction <add>, %117, %cst_52 [1] : vector<2x32xf32> to vector<2xf32>
    %119 = vector.shape_cast %118 : vector<2xf32> to vector<2x1xf32>
    %120 = tpu.reciprocal %119 {approx = true} : vector<2x1xf32> -> vector<2x1xf32>
    %cst_53 = arith.constant dense<0.000000e+00> : vector<2x64xf32>
    %121 = tpu.matmul %117, %116, %cst_53 {dimension_numbers = #tpu.dot_dimension_numbers<[1], [0], [0], [1], [0, 0, 1, 1], [], []>} : vector<2x32xf32>, vector<32x64xf32>, vector<2x64xf32> -> vector<2x64xf32>
    %122 = vector.broadcast %120 : vector<2x1xf32> to vector<2x64xf32>
    %123 = arith.mulf %121, %122 : vector<2x64xf32>
    %c0_54 = arith.constant 0 : index
    %c0_55 = arith.constant 0 : index
    %124 = vector.load %arg9[%c0_54, %c0_55] : memref<64x32xf32, #tpu.memory_space<vmem>>, vector<64x32xf32>
    %cst_56 = arith.constant dense<0.000000e+00> : vector<2x32xf32>
    %125 = tpu.matmul %123, %124, %cst_56 {dimension_numbers = #tpu.dot_dimension_numbers<[1], [0], [0], [1], [0, 0, 1, 1], [], []>} : vector<2x64xf32>, vector<64x32xf32>, vector<2x32xf32> -> vector<2x32xf32>
    %126 = vector.broadcast %7 : vector<1x32xf32> to vector<2x32xf32>
    %127 = arith.addf %125, %126 : vector<2x32xf32>
    %cst_57 = arith.constant 0.000000e+00 : f32
    %128 = vector.broadcast %cst_57 : f32 to vector<2x32xf32>
    %129 = arith.maximumf %127, %128 : vector<2x32xf32>
    %c0_58 = arith.constant 0 : index
    %c0_59 = arith.constant 0 : index
    %130 = vector.load %arg10[%c0_58, %c0_59] : memref<32x128xf32, #tpu.memory_space<vmem>>, vector<32x128xf32>
    %cst_60 = arith.constant dense<0.000000e+00> : vector<2x128xf32>
    %131 = tpu.matmul %129, %130, %cst_60 {dimension_numbers = #tpu.dot_dimension_numbers<[1], [0], [0], [1], [0, 0, 1, 1], [], []>} : vector<2x32xf32>, vector<32x128xf32>, vector<2x128xf32> -> vector<2x128xf32>
    %132 = vector.broadcast %8 : vector<1x128xf32> to vector<2x128xf32>
    %133 = arith.addf %131, %132 : vector<2x128xf32>
    %c0_61 = arith.constant 0 : index
    %c0_62 = arith.constant 0 : index
    %134 = vector.load %arg12[%c0_61, %c0_62] : memref<2x128xf32, #tpu.memory_space<vmem>>, vector<2x128xf32>
    tpu.vector_store %arg12[%c0_61, %c0_62], %133 {strides = array<i32>} : memref<2x128xf32, #tpu.memory_space<vmem>>, vector<2x128xf32>,
    return
  }
  func.func @transform_0(%arg0: i32) -> (i32, i32) {
    %c0_i32 = arith.constant 0 : i32
    %c0_i32_0 = arith.constant 0 : i32
    %c0_i32_1 = arith.constant 0 : i32
    return %c0_i32, %c0_i32_0 : i32, i32
  }
  func.func @transform_1(%arg0: i32) -> (i32, i32) {
    %c0_i32 = arith.constant 0 : i32
    %c0_i32_0 = arith.constant 0 : i32
    %c0_i32_1 = arith.constant 0 : i32
    return %c0_i32, %c0_i32_0 : i32, i32
  }
  func.func @transform_2(%arg0: i32) -> (i32, i32) {
    %c0_i32 = arith.constant 0 : i32
    %c0_i32_0 = arith.constant 0 : i32
    %c0_i32_1 = arith.constant 0 : i32
    return %c0_i32, %c0_i32_0 : i32, i32
  }
  func.func @transform_3(%arg0: i32) -> (i32, i32) {
    %c0_i32 = arith.constant 0 : i32
    %c0_i32_0 = arith.constant 0 : i32
    %c0_i32_1 = arith.constant 0 : i32
    return %c0_i32, %c0_i32_0 : i32, i32
  }
  func.func @transform_4(%arg0: i32) -> (i32, i32) {
    %c0_i32 = arith.constant 0 : i32
    %c0_i32_0 = arith.constant 0 : i32
    %c0_i32_1 = arith.constant 0 : i32
    return %c0_i32, %c0_i32_0 : i32, i32
  }
  func.func @transform_5(%arg0: i32) -> (i32, i32) {
    %c0_i32 = arith.constant 0 : i32
    %c0_i32_0 = arith.constant 0 : i32
    %c0_i32_1 = arith.constant 0 : i32
    return %c0_i32, %c0_i32_0 : i32, i32
  }
  func.func @transform_6(%arg0: i32) -> (i32, i32) {
    %c0_i32 = arith.constant 0 : i32
    %c0_i32_0 = arith.constant 0 : i32
    %c0_i32_1 = arith.constant 0 : i32
    return %c0_i32, %c0_i32_0 : i32, i32
  }
  func.func @transform_7(%arg0: i32) -> (i32, i32) {
    %c0_i32 = arith.constant 0 : i32
    %c0_i32_0 = arith.constant 0 : i32
    %c0_i32_1 = arith.constant 0 : i32
    return %c0_i32, %c0_i32_0 : i32, i32
  }
  func.func @transform_8(%arg0: i32) -> (i32, i32) {
    %c0_i32 = arith.constant 0 : i32
    %c0_i32_0 = arith.constant 0 : i32
    %c0_i32_1 = arith.constant 0 : i32
    return %c0_i32, %c0_i32_0 : i32, i32
  }
  func.func @transform_9(%arg0: i32) -> (i32, i32) {
    %c0_i32 = arith.constant 0 : i32
    %c0_i32_0 = arith.constant 0 : i32
    %c0_i32_1 = arith.constant 0 : i32
    return %c0_i32, %c0_i32_0 : i32, i32
  }
  func.func @transform_10(%arg0: i32) -> (i32, i32) {
    %c0_i32 = arith.constant 0 : i32
    %c0_i32_0 = arith.constant 0 : i32
    %c0_i32_1 = arith.constant 0 : i32
    return %c0_i32, %c0_i32_0 : i32, i32
  }
  func.func @transform_11(%arg0: i32) -> (i32, i32) {
    %c0_i32 = arith.constant 0 : i32
    %c0_i32_0 = arith.constant 0 : i32
    %c0_i32_1 = arith.constant 0 : i32
    return %c0_i32, %c0_i32_0 : i32, i32
  }
}

</mosaic_0001>

<llo_original>
// kernel: dagcn_bert_forward.1
$region0: #{dagcn_bert_forward.1}
  #allocation0 [shape = 'u32[]', space=smem, size = 0x4, offset = 0x4, fixed_abs, tag = 'smem constant byte address 0x4 - core index']
  #allocation1 [shape = 'u32[144,128]{1,0:T(1,128)}', space=vmem, size = 0x12000, scoped, tag = 'internal scratch']
  %s0 = inlined_call_operand.vmem [shape: f32[32,64], index: 0, kind: input, shape index: {}]
  %s1 = inlined_call_operand.vmem [shape: f32[32,32], index: 1, kind: input, shape index: {}]
  %s2 = inlined_call_operand.vmem [shape: f32[32,1], index: 2, kind: input, shape index: {}]
  %s3 = inlined_call_operand.vmem [shape: f32[2,32], index: 3, kind: input, shape index: {}]
  %s4 = inlined_call_operand.vmem [shape: f32[64,128], index: 4, kind: input, shape index: {}]
  %s5 = inlined_call_operand.vmem [shape: f32[128,128], index: 5, kind: input, shape index: {}]
  %s6 = inlined_call_operand.vmem [shape: f32[128,64], index: 6, kind: input, shape index: {}]
  %s7 = inlined_call_operand.vmem [shape: f32[64,64], index: 7, kind: input, shape index: {}]
  %s8 = inlined_call_operand.vmem [shape: f32[64,32], index: 8, kind: input, shape index: {}]
  %s9 = inlined_call_operand.vmem [shape: f32[32,128], index: 9, kind: input, shape index: {}]
  %s10 = inlined_call_operand.vmem [shape: f32[8,128], index: 10, kind: input, shape index: {}]
  %s11 = inlined_call_operand.vmem [shape: f32[2,128], index: 11, kind: output, shape index: {}]
  %s12 = sld [smem:[#allocation0]]
  $region54: #{dagcn_bert_forward.1} parent=0
    _
  %s14 = ssub.s32 1, %s12
  %s15 = scalar_select 0, %s14, %s12
  // Predicated region
  $region2: #{dagcn_bert_forward.1} parent=0 // pred_check
    _
  $region3: #{dagcn_bert_forward.1} parent=0 // pred_check_branch
    %17 = sbr.rel (0) target = $region5
  $region4: #{dagcn_bert_forward.1} parent=0 // pred_region
    _
  $region5: #{dagcn_bert_forward.1} parent=0 // pred_fallthru
    _
  // Predicated region
  $region6: #{dagcn_bert_forward.1} parent=0 // pred_check
    _
  $region7: #{dagcn_bert_forward.1} parent=0 // pred_check_branch
    %19 = sbr.rel (0) target = $region9
  $region8: #{dagcn_bert_forward.1} parent=0 // pred_region
    _
  $region9: #{dagcn_bert_forward.1} parent=0 // pred_fallthru
    _
  // Predicated region
  $region10: #{dagcn_bert_forward.1} parent=0 // pred_check
    _
  $region11: #{dagcn_bert_forward.1} parent=0 // pred_check_branch
    %21 = sbr.rel (0) target = $region13
  $region12: #{dagcn_bert_forward.1} parent=0 // pred_region
    _
  $region13: #{dagcn_bert_forward.1} parent=0 // pred_fallthru
    _
  // Predicated region
  $region14: #{dagcn_bert_forward.1} parent=0 // pred_check
    _
  $region15: #{dagcn_bert_forward.1} parent=0 // pred_check_branch
    %23 = sbr.rel (0) target = $region17
  $region16: #{dagcn_bert_forward.1} parent=0 // pred_region
    _
  $region17: #{dagcn_bert_forward.1} parent=0 // pred_fallthru
    _
  // Predicated region
  $region18: #{dagcn_bert_forward.1} parent=0 // pred_check
    _
  $region19: #{dagcn_bert_forward.1} parent=0 // pred_check_branch
    %25 = sbr.rel (0) target = $region21
  $region20: #{dagcn_bert_forward.1} parent=0 // pred_region
    _
  $region21: #{dagcn_bert_forward.1} parent=0 // pred_fallthru
    _
  // Predicated region
  $region22: #{dagcn_bert_forward.1} parent=0 // pred_check
    _
  $region23: #{dagcn_bert_forward.1} parent=0 // pred_check_branch
    %27 = sbr.rel (0) target = $region25
  $region24: #{dagcn_bert_forward.1} parent=0 // pred_region
    _
  $region25: #{dagcn_bert_forward.1} parent=0 // pred_fallthru
    _
  // Predicated region
  $region26: #{dagcn_bert_forward.1} parent=0 // pred_check
    _
  $region27: #{dagcn_bert_forward.1} parent=0 // pred_check_branch
    %29 = sbr.rel (0) target = $region29
  $region28: #{dagcn_bert_forward.1} parent=0 // pred_region
    _
  $region29: #{dagcn_bert_forward.1} parent=0 // pred_fallthru
    _
  // Predicated region
  $region30: #{dagcn_bert_forward.1} parent=0 // pred_check
    _
  $region31: #{dagcn_bert_forward.1} parent=0 // pred_check_branch
    %31 = sbr.rel (0) target = $region33
  $region32: #{dagcn_bert_forward.1} parent=0 // pred_region
    _
  $region33: #{dagcn_bert_forward.1} parent=0 // pred_fallthru
    _
  // Predicated region
  $region34: #{dagcn_bert_forward.1} parent=0 // pred_check
    _
  $region35: #{dagcn_bert_forward.1} parent=0 // pred_check_branch
    %33 = sbr.rel (0) target = $region37
  $region36: #{dagcn_bert_forward.1} parent=0 // pred_region
    _
  $region37: #{dagcn_bert_forward.1} parent=0 // pred_fallthru
    _
  // Predicated region
  $region38: #{dagcn_bert_forward.1} parent=0 // pred_check
    _
  $region39: #{dagcn_bert_forward.1} parent=0 // pred_check_branch
    %35 = sbr.rel (0) target = $region41
  $region40: #{dagcn_bert_forward.1} parent=0 // pred_region
    _
  $region41: #{dagcn_bert_forward.1} parent=0 // pred_fallthru
    _
  // Predicated region
  $region42: #{dagcn_bert_forward.1} parent=0 // pred_check
    _
  $region43: #{dagcn_bert_forward.1} parent=0 // pred_check_branch
    %37 = sbr.rel (0) target = $region45
  $region44: #{dagcn_bert_forward.1} parent=0 // pred_region
    _
  $region45: #{dagcn_bert_forward.1} parent=0 // pred_fallthru
    _
  %v38 = vld [vmem:[%s0] sm:$0xff]
  %v39 = vld [vmem:[%s0 + $0x8] sm:$0xff]
  %v40 = vld [vmem:[%s0 + $0x10] sm:$0xff]
  %v41 = vld [vmem:[%s0 + $0x18] sm:$0xff]
  %v42 = vld [vmem:[%s1] sm:$0xff]
  %v43 = vld [vmem:[%s1 + $0x8] sm:$0xff]
  %v44 = vld [vmem:[%s1 + $0x10] sm:$0xff]
  %v45 = vld [vmem:[%s1 + $0x18] sm:$0xff]
  %v46 = vld [vmem:[%s10] sm:$0x1]
  %v47 = vld [vmem:[%s10 + $0x1] sm:$0x1]
  %v48 = vld [vmem:[%s10 + $0x2] sm:$0x1]
  %v49 = vld [vmem:[%s10 + $0x3] sm:$0x1]
  %v50 = vld [vmem:[%s10 + $0x4] sm:$0x1]
  %v51 = vld [vmem:[%s10 + $0x5] sm:$0x1]
  %v52 = vld [vmem:[%s10 + $0x6] sm:$0x1]
  %vm53 = vcmask 523264
  %v54 = vsel %vm53, %v38, 0.0
  %55 = vadd.xlane.f32.xlu0 %v54
  %v56 = vpop.xlane.xlu0 %55
  %v57 = vsel %vm53, %v39, 0.0
  %58 = vadd.xlane.f32.xlu0 %v57
  %v59 = vpop.xlane.xlu0 %58
  %v60 = vsel %vm53, %v40, 0.0
  %61 = vadd.xlane.f32.xlu0 %v60
  %v62 = vpop.xlane.xlu0 %61
  %v63 = vsel %vm53, %v41, 0.0
  %64 = vadd.xlane.f32.xlu0 %v63
  %v65 = vpop.xlane.xlu0 %64
  %v66 = vrcp.pop 64.0
  %v67 = vmul.f32 %v56, %v66
  %v68 = vmul.f32 %v59, %v66
  %v69 = vmul.f32 %v62, %v66
  %v70 = vmul.f32 %v65, %v66
  %v71 = vsub.f32 %v38, %v67
  %v72 = vsub.f32 %v39, %v68
  %v73 = vsub.f32 %v40, %v69
  %v74 = vsub.f32 %v41, %v70
  %v75 = vmul.f32 %v71, %v71
  %v76 = vmul.f32 %v72, %v72
  %v77 = vmul.f32 %v73, %v73
  %v78 = vmul.f32 %v74, %v74
  %v79 = vsel %vm53, %v75, 0.0
  %80 = vadd.xlane.f32.xlu0 %v79
  %v81 = vpop.xlane.xlu0 %80
  %v82 = vsel %vm53, %v76, 0.0
  %83 = vadd.xlane.f32.xlu0 %v82
  %v84 = vpop.xlane.xlu0 %83
  %v85 = vsel %vm53, %v77, 0.0
  %86 = vadd.xlane.f32.xlu0 %v85
  %v87 = vpop.xlane.xlu0 %86
  %v88 = vsel %vm53, %v78, 0.0
  %89 = vadd.xlane.f32.xlu0 %v88
  %v90 = vpop.xlane.xlu0 %89
  %v91 = vmul.f32 %v81, %v66
  %v92 = vmul.f32 %v84, %v66
  %v93 = vmul.f32 %v87, %v66
  %v94 = vmul.f32 %v90, %v66
  %v95 = vadd.f32 %v91, 1e-05
  %v96 = vadd.f32 %v92, 1e-05
  %v97 = vadd.f32 %v93, 1e-05
  %v98 = vadd.f32 %v94, 1e-05
  %v99 = vrsqrt.pop %v95
  %v100 = vrsqrt.pop %v96
  %v101 = vrsqrt.pop %v97
  %v102 = vrsqrt.pop %v98
  %v103 = vmul.f32 %v71, %v99
  %v104 = vmul.f32 %v72, %v100
  %v105 = vmul.f32 %v73, %v101
  %v106 = vmul.f32 %v74, %v102
  %v107 = vlaneseq
  %v108 = vshrl.u32 %v107, 7
  %v109 = vsub.s32 0, %v108
  %v110 = vrot.slane %v46, %v109
  %v111 = vmul.f32 %v103, %v110
  %v112 = vmul.f32 %v104, %v110
  %v113 = vmul.f32 %v105, %v110
  %v114 = vmul.f32 %v106, %v110
  %v115 = vlaneseq
  %v116 = vshrl.u32 %v115, 7
  %v117 = vsub.s32 0, %v116
  %v118 = vrot.slane %v47, %v117
  %v119 = vadd.f32 %v111, %v118
  %v120 = vadd.f32 %v112, %v118
  %v121 = vadd.f32 %v113, %v118
  %v122 = vadd.f32 %v114, %v118
  %v123 = vrot.slane %v119, 1
  %v124 = vrot.slane %v120, 1
  %v125 = vrot.slane %v121, 1
  %v126 = vrot.slane %v122, 1
  %v127 = vlaneseq
  %v128 = vshrl.u32 %v127, 7
  %vm129 = vcmp.lt.s32.totalorder %v128, 7
  %v130 = vsel %vm129, %v125, %v126
  %v131 = vsel %vm129, %v124, %v125
  %v132 = vsel %vm129, %v123, %v124
  %v133 = vsel %vm129, %v126, %v123
  %v134 = vadd.s32 %v128, 8
  %v135 = vadd.s32 %v128, 16
  %v136 = vadd.s32 %v128, 24
  %v137 = vand.u32 %v128, 15
  %v138 = vand.u32 %v134, 15
  %v139 = vand.u32 %v135, 15
  %v140 = vand.u32 %v136, 15
  %vm141 = vcmp.eq.s32.totalorder %v137, 15
  %vm142 = vcmp.eq.s32.totalorder %v138, 15
  %vm143 = vcmp.eq.s32.totalorder %v139, 15
  %vm144 = vcmp.eq.s32.totalorder %v140, 15
  %v145 = vsel %vm141, 0.0, 1.0
  %v146 = vsel %vm142, 0.0, 1.0
  %v147 = vsel %vm143, 0.0, 1.0
  %v148 = vsel %vm144, 0.0, 1.0
  %v149 = vld [vmem:[%s2] sm:$0xff]
  %v150 = vld [vmem:[%s2 + $0x8] sm:$0xff]
  %v151 = vld [vmem:[%s2 + $0x10] sm:$0xff]
  %v152 = vld [vmem:[%s2 + $0x18] sm:$0xff]
  %154 = vset.pattern.permute.xlu0 0
  %155 = vperm.xlu0 %154, %v149
  %v156 = vpop.permute.xlu0 %155
  %159 = vset.pattern.permute.xlu0 0
  %160 = vperm.xlu0 %159, %v150
  %v161 = vpop.permute.xlu0 %160
  %164 = vset.pattern.permute.xlu0 0
  %165 = vperm.xlu0 %164, %v151
  %v166 = vpop.permute.xlu0 %165
  %169 = vset.pattern.permute.xlu0 0
  %170 = vperm.xlu0 %169, %v152
  %v171 = vpop.permute.xlu0 %170
  %v173 = vmul.f32 %v132, %v156
  %v174 = vmul.f32 %v131, %v161
  %v175 = vmul.f32 %v130, %v166
  %v176 = vmul.f32 %v133, %v171
  %v177 = vmul.f32 %v173, %v145
  %v178 = vmul.f32 %v174, %v146
  %v179 = vmul.f32 %v175, %v147
  %v180 = vmul.f32 %v176, %v148
  %vm181 = vcmask 261120
  %v182 = vsel %vm181, %v42, 0.0
  %183 = vadd.xlane.f32.xlu0 %v182
  %v184 = vpop.xlane.xlu0 %183
  %v185 = vsel %vm181, %v43, 0.0
  %186 = vadd.xlane.f32.xlu0 %v185
  %v187 = vpop.xlane.xlu0 %186
  %v188 = vsel %vm181, %v44, 0.0
  %189 = vadd.xlane.f32.xlu0 %v188
  %v190 = vpop.xlane.xlu0 %189
  %v191 = vsel %vm181, %v45, 0.0
  %192 = vadd.xlane.f32.xlu0 %v191
  %v193 = vpop.xlane.xlu0 %192
  %v194 = vadd.f32 %v184, 1.0
  %v195 = vadd.f32 %v187, 1.0
  %v196 = vadd.f32 %v190, 1.0
  %v197 = vadd.f32 %v193, 1.0
  %v198 = vrcp.pop %v194
  %v199 = vrcp.pop %v195
  %v200 = vrcp.pop %v196
  %v201 = vrcp.pop %v197
  %v203 = vsel %vm181, %v42, 0
  %v206 = vsel %vm181, %v43, 0
  %v209 = vsel %vm181, %v44, 0
  %v212 = vsel %vm181, %v45, 0
  %214 = vmatprep.subr.mxu0 0.0
  %215 = vmatpush1.msra.mxu0 0.0
  %216 = vmatprep.subr.mxu0 0.0
  %217 = vmatpush1.msra.mxu0 0.0
  %218 = vmatprep.subr.mxu0 0.0
  %219 = vmatpush1.msra.mxu0 0.0
  %220 = vmatprep.subr.mxu0 0.0
  %221 = vmatpush1.msra.mxu0 0.0
  %222 = vmatprep.subr.mxu0 0.0
  %223 = vmatpush1.msra.mxu0 0.0
  %224 = vmatprep.subr.mxu0 0.0
  %225 = vmatpush1.msra.mxu0 0.0
  %226 = vmatprep.subr.mxu0 0.0
  %227 = vmatpush1.msra.mxu0 0.0
  %228 = vmatprep.subr.mxu0 0.0
  %229 = vmatpush1.msra.mxu0 0.0
  %230 = vmatprep.subr.mxu0 0.0
  %231 = vmatpush1.msra.mxu0 0.0
  %232 = vmatprep.subr.mxu0 0.0
  %233 = vmatpush1.msra.mxu0 0.0
  %234 = vmatprep.subr.mxu0 0.0
  %235 = vmatpush1.msra.mxu0 0.0
  %236 = vmatprep.subr.mxu0 0.0
  %237 = vmatpush1.msra.mxu0 0.0
  %238 = vmatprep.subr.mxu0 0.0
  %239 = vmatpush1.msra.mxu0 %v180
  %240 = vmatprep.subr.mxu0 0.0
  %241 = vmatpush1.msra.mxu0 %v179
  %242 = vmatprep.subr.mxu0 0.0
  %243 = vmatpush1.msra.mxu0 %v178
  %244 = vmatprep.subr.mxu0 0.0
  %245 = vmatpush1.msra.mxu0 %v177
  %246 = vmatprep.subr.mxu0 0.0
  %247 = vmatpush2.msra.mxu0 0.0
  %248 = vmatprep.subr.mxu0 0.0
  %249 = vmatpush2.msra.mxu0 0.0
  %250 = vmatprep.subr.mxu0 0.0
  %251 = vmatpush2.msra.mxu0 0.0
  %252 = vmatprep.subr.mxu0 0.0
  %253 = vmatpush2.msra.mxu0 0.0
  %254 = vmatprep.subr.mxu0 0.0
  %255 = vmatpush2.msra.mxu0 0.0
  %256 = vmatprep.subr.mxu0 0.0
  %257 = vmatpush2.msra.mxu0 0.0
  %258 = vmatprep.subr.mxu0 0.0
  %259 = vmatpush2.msra.mxu0 0.0
  %260 = vmatprep.subr.mxu0 0.0
  %261 = vmatpush2.msra.mxu0 0.0
  %262 = vmatprep.subr.mxu0 0.0
  %263 = vmatpush2.msra.mxu0 0.0
  %264 = vmatprep.subr.mxu0 0.0
  %265 = vmatpush2.msra.mxu0 0.0
  %266 = vmatprep.subr.mxu0 0.0
  %267 = vmatpush2.msra.mxu0 0.0
  %268 = vmatprep.subr.mxu0 0.0
  %269 = vmatpush2.msra.mxu0 0.0
  %270 = vmatprep.subr.mxu0 0.0
  %271 = vmatpush2.msra.mxu0 0.0
  %272 = vmatprep.subr.mxu0 0.0
  %273 = vmatpush2.msra.mxu0 0.0
  %274 = vmatprep.subr.mxu0 0.0
  %275 = vmatpush2.msra.mxu0 0.0
  %276 = vmatprep.subr.mxu0 0.0
  %277 = vmatpush2.msra.mxu0 0.0
  %278 = vmatprep.mubr.f32.mxu0 0.0
  %279 = vmatmul.mubr.f32.gmra.mxu0 %v203
  %v280 = vpop.f32.mrf.mxu0
  %v281 = vadd.f32 0.0, %v280
  %v282 = vpop.f32.mrf.mxu0
  %283 = vmatprep.mubr.f32.mxu0 0.0
  %284 = vmatmul.mubr.f32.gmra.mxu0 %v206
  %v285 = vpop.f32.mrf.mxu0
  %v286 = vadd.f32 0.0, %v285
  %v287 = vpop.f32.mrf.mxu0
  %288 = vmatprep.mubr.f32.mxu0 0.0
  %289 = vmatmul.mubr.f32.gmra.mxu0 %v209
  %v290 = vpop.f32.mrf.mxu0
  %v291 = vadd.f32 0.0, %v290
  %v292 = vpop.f32.mrf.mxu0
  %293 = vmatprep.mubr.f32.mxu0 0.0
  %294 = vmatmul.mubr.f32.gmra.mxu0 %v212
  %v295 = vpop.f32.mrf.mxu0
  %v296 = vadd.f32 0.0, %v295
  %v297 = vpop.f32.mrf.mxu0
  %298 = vdwg.mxu0
  %v299 = vld [vmem:[%s4] sm:$0xff]
  %v300 = vld [vmem:[%s4 + $0x8] sm:$0xff]
  %v301 = vld [vmem:[%s4 + $0x10] sm:$0xff]
  %v302 = vld [vmem:[%s4 + $0x18] sm:$0xff]
  %v303 = vld [vmem:[%s4 + $0x20] sm:$0xff]
  %v304 = vld [vmem:[%s4 + $0x28] sm:$0xff]
  %v305 = vld [vmem:[%s4 + $0x30] sm:$0xff]
  %v306 = vld [vmem:[%s4 + $0x38] sm:$0xff]
  %v307 = vlaneseq
  %v308 = vshrl.u32 %v307, 7
  %v309 = vsub.s32 0, %v308
  %v310 = vrot.slane %v48, %v309
  %v312 = vsel %vm53, %v281, 0
  %v315 = vsel %vm53, %v286, 0
  %v318 = vsel %vm53, %v291, 0
  %v321 = vsel %vm53, %v296, 0
  %323 = vmatprep.subr.mxu0 0.0
  %324 = vmatpush1.msra.mxu0 0.0
  %325 = vmatprep.subr.mxu0 0.0
  %326 = vmatpush1.msra.mxu0 0.0
  %327 = vmatprep.subr.mxu0 0.0
  %328 = vmatpush1.msra.mxu0 0.0
  %329 = vmatprep.subr.mxu0 0.0
  %330 = vmatpush1.msra.mxu0 0.0
  %331 = vmatprep.subr.mxu0 0.0
  %332 = vmatpush1.msra.mxu0 0.0
  %333 = vmatprep.subr.mxu0 0.0
  %334 = vmatpush1.msra.mxu0 0.0
  %335 = vmatprep.subr.mxu0 0.0
  %336 = vmatpush1.msra.mxu0 0.0
  %337 = vmatprep.subr.mxu0 0.0
  %338 = vmatpush1.msra.mxu0 0.0
  %339 = vmatprep.subr.mxu0 0.0
  %340 = vmatpush1.msra.mxu0 %v306
  %341 = vmatprep.subr.mxu0 0.0
  %342 = vmatpush1.msra.mxu0 %v305
  %343 = vmatprep.subr.mxu0 0.0
  %344 = vmatpush1.msra.mxu0 %v304
  %345 = vmatprep.subr.mxu0 0.0
  %346 = vmatpush1.msra.mxu0 %v303
  %347 = vmatprep.subr.mxu0 0.0
  %348 = vmatpush1.msra.mxu0 %v302
  %349 = vmatprep.subr.mxu0 0.0
  %350 = vmatpush1.msra.mxu0 %v301
  %351 = vmatprep.subr.mxu0 0.0
  %352 = vmatpush1.msra.mxu0 %v300
  %353 = vmatprep.subr.mxu0 0.0
  %354 = vmatpush1.msra.mxu0 %v299
  %355 = vmatprep.subr.mxu0 0.0
  %356 = vmatpush2.msra.mxu0 0.0
  %357 = vmatprep.subr.mxu0 0.0
  %358 = vmatpush2.msra.mxu0 0.0
  %359 = vmatprep.subr.mxu0 0.0
  %360 = vmatpush2.msra.mxu0 0.0
  %361 = vmatprep.subr.mxu0 0.0
  %362 = vmatpush2.msra.mxu0 0.0
  %363 = vmatprep.subr.mxu0 0.0
  %364 = vmatpush2.msra.mxu0 0.0
  %365 = vmatprep.subr.mxu0 0.0
  %366 = vmatpush2.msra.mxu0 0.0
  %367 = vmatprep.subr.mxu0 0.0
  %368 = vmatpush2.msra.mxu0 0.0
  %369 = vmatprep.subr.mxu0 0.0
  %370 = vmatpush2.msra.mxu0 0.0
  %371 = vmatprep.subr.mxu0 0.0
  %372 = vmatpush2.msra.mxu0 0.0
  %373 = vmatprep.subr.mxu0 0.0
  %374 = vmatpush2.msra.mxu0 0.0
  %375 = vmatprep.subr.mxu0 0.0
  %376 = vmatpush2.msra.mxu0 0.0
  %377 = vmatprep.subr.mxu0 0.0
  %378 = vmatpush2.msra.mxu0 0.0
  %379 = vmatprep.subr.mxu0 0.0
  %380 = vmatpush2.msra.mxu0 0.0
  %381 = vmatprep.subr.mxu0 0.0
  %382 = vmatpush2.msra.mxu0 0.0
  %383 = vmatprep.subr.mxu0 0.0
  %384 = vmatpush2.msra.mxu0 0.0
  %385 = vmatprep.subr.mxu0 0.0
  %386 = vmatpush2.msra.mxu0 0.0
  %387 = vmatprep.mubr.f32.mxu0 0.0
  %388 = vmatmul.mubr.f32.gmra.mxu0 %v312
  %v389 = vpop.f32.mrf.mxu0
  %v390 = vadd.f32 %v310, %v389
  %v391 = vpop.f32.mrf.mxu0
  %392 = vmatprep.mubr.f32.mxu0 0.0
  %393 = vmatmul.mubr.f32.gmra.mxu0 %v315
  %v394 = vpop.f32.mrf.mxu0
  %v395 = vadd.f32 %v310, %v394
  %v396 = vpop.f32.mrf.mxu0
  %397 = vmatprep.mubr.f32.mxu0 0.0
  %398 = vmatmul.mubr.f32.gmra.mxu0 %v318
  %v399 = vpop.f32.mrf.mxu0
  %v400 = vadd.f32 %v310, %v399
  %v401 = vpop.f32.mrf.mxu0
  %402 = vmatprep.mubr.f32.mxu0 0.0
  %403 = vmatmul.mubr.f32.gmra.mxu0 %v321
  %v404 = vpop.f32.mrf.mxu0
  %v405 = vadd.f32 %v310, %v404
  %v406 = vpop.f32.mrf.mxu0
  %407 = vdwg.mxu0
  %v408 = vmul.f32 %v390, %v198
  %v409 = vmul.f32 %v395, %v199
  %v410 = vmul.f32 %v400, %v200
  %v411 = vmul.f32 %v405, %v201
  %v412 = vmax.f32 %v408, 0.0
  %v413 = vmax.f32 %v409, 0.0
  %v414 = vmax.f32 %v410, 0.0
  %v415 = vmax.f32 %v411, 0.0
  %416 = vmatprep.subr.mxu0 0.0
  %417 = vmatpush1.msra.mxu0 0.0
  %418 = vmatprep.subr.mxu0 0.0
  %419 = vmatpush1.msra.mxu0 0.0
  %420 = vmatprep.subr.mxu0 0.0
  %421 = vmatpush1.msra.mxu0 0.0
  %422 = vmatprep.subr.mxu0 0.0
  %423 = vmatpush1.msra.mxu0 0.0
  %424 = vmatprep.subr.mxu0 0.0
  %425 = vmatpush1.msra.mxu0 0.0
  %426 = vmatprep.subr.mxu0 0.0
  %427 = vmatpush1.msra.mxu0 0.0
  %428 = vmatprep.subr.mxu0 0.0
  %429 = vmatpush1.msra.mxu0 0.0
  %430 = vmatprep.subr.mxu0 0.0
  %431 = vmatpush1.msra.mxu0 0.0
  %432 = vmatprep.subr.mxu0 0.0
  %433 = vmatpush1.msra.mxu0 0.0
  %434 = vmatprep.subr.mxu0 0.0
  %435 = vmatpush1.msra.mxu0 0.0
  %436 = vmatprep.subr.mxu0 0.0
  %437 = vmatpush1.msra.mxu0 0.0
  %438 = vmatprep.subr.mxu0 0.0
  %439 = vmatpush1.msra.mxu0 0.0
  %440 = vmatprep.subr.mxu0 0.0
  %441 = vmatpush1.msra.mxu0 %v415
  %442 = vmatprep.subr.mxu0 0.0
  %443 = vmatpush1.msra.mxu0 %v414
  %444 = vmatprep.subr.mxu0 0.0
  %445 = vmatpush1.msra.mxu0 %v413
  %446 = vmatprep.subr.mxu0 0.0
  %447 = vmatpush1.msra.mxu0 %v412
  %448 = vmatprep.subr.mxu0 0.0
  %449 = vmatpush2.msra.mxu0 0.0
  %450 = vmatprep.subr.mxu0 0.0
  %451 = vmatpush2.msra.mxu0 0.0
  %452 = vmatprep.subr.mxu0 0.0
  %453 = vmatpush2.msra.mxu0 0.0
  %454 = vmatprep.subr.mxu0 0.0
  %455 = vmatpush2.msra.mxu0 0.0
  %456 = vmatprep.subr.mxu0 0.0
  %457 = vmatpush2.msra.mxu0 0.0
  %458 = vmatprep.subr.mxu0 0.0
  %459 = vmatpush2.msra.mxu0 0.0
  %460 = vmatprep.subr.mxu0 0.0
  %461 = vmatpush2.msra.mxu0 0.0
  %462 = vmatprep.subr.mxu0 0.0
  %463 = vmatpush2.msra.mxu0 0.0
  %464 = vmatprep.subr.mxu0 0.0
  %465 = vmatpush2.msra.mxu0 0.0
  %466 = vmatprep.subr.mxu0 0.0
  %467 = vmatpush2.msra.mxu0 0.0
  %468 = vmatprep.subr.mxu0 0.0
  %469 = vmatpush2.msra.mxu0 0.0
  %470 = vmatprep.subr.mxu0 0.0
  %471 = vmatpush2.msra.mxu0 0.0
  %472 = vmatprep.subr.mxu0 0.0
  %473 = vmatpush2.msra.mxu0 0.0
  %474 = vmatprep.subr.mxu0 0.0
  %475 = vmatpush2.msra.mxu0 0.0
  %476 = vmatprep.subr.mxu0 0.0
  %477 = vmatpush2.msra.mxu0 0.0
  %478 = vmatprep.subr.mxu0 0.0
  %479 = vmatpush2.msra.mxu0 0.0
  %480 = vmatprep.mubr.f32.mxu0 0.0
  %481 = vmatmul.mubr.f32.gmra.mxu0 %v203
  %v482 = vpop.f32.mrf.mxu0
  %v483 = vadd.f32 0.0, %v482
  %v484 = vpop.f32.mrf.mxu0
  %485 = vmatprep.mubr.f32.mxu0 0.0
  %486 = vmatmul.mubr.f32.gmra.mxu0 %v206
  %v487 = vpop.f32.mrf.mxu0
  %v488 = vadd.f32 0.0, %v487
  %v489 = vpop.f32.mrf.mxu0
  %490 = vmatprep.mubr.f32.mxu0 0.0
  %491 = vmatmul.mubr.f32.gmra.mxu0 %v209
  %v492 = vpop.f32.mrf.mxu0
  %v493 = vadd.f32 0.0, %v492
  %v494 = vpop.f32.mrf.mxu0
  %495 = vmatprep.mubr.f32.mxu0 0.0
  %496 = vmatmul.mubr.f32.gmra.mxu0 %v212
  %v497 = vpop.f32.mrf.mxu0
  %v498 = vadd.f32 0.0, %v497
  %v499 = vpop.f32.mrf.mxu0
  %500 = vdwg.mxu0
  %v501 = vld [vmem:[%s5] sm:$0xff]
  %v502 = vld [vmem:[%s5 + $0x8] sm:$0xff]
  %v503 = vld [vmem:[%s5 + $0x10] sm:$0xff]
  %v504 = vld [vmem:[%s5 + $0x18] sm:$0xff]
  %v505 = vld [vmem:[%s5 + $0x20] sm:$0xff]
  %v506 = vld [vmem:[%s5 + $0x28] sm:$0xff]
  %v507 = vld [vmem:[%s5 + $0x30] sm:$0xff]
  %v508 = vld [vmem:[%s5 + $0x38] sm:$0xff]
  %v509 = vld [vmem:[%s5 + $0x40] sm:$0xff]
  %v510 = vld [vmem:[%s5 + $0x48] sm:$0xff]
  %v511 = vld [vmem:[%s5 + $0x50] sm:$0xff]
  %v512 = vld [vmem:[%s5 + $0x58] sm:$0xff]
  %v513 = vld [vmem:[%s5 + $0x60] sm:$0xff]
  %v514 = vld [vmem:[%s5 + $0x68] sm:$0xff]
  %v515 = vld [vmem:[%s5 + $0x70] sm:$0xff]
  %v516 = vld [vmem:[%s5 + $0x78] sm:$0xff]
  %v517 = vlaneseq
  %v518 = vshrl.u32 %v517, 7
  %v519 = vsub.s32 0, %v518
  %v520 = vrot.slane %v49, %v519
  %521 = vmatprep.subr.mxu0 0.0
  %522 = vmatpush1.msra.mxu0 %v516
  %523 = vmatprep.subr.mxu0 0.0
  %524 = vmatpush1.msra.mxu0 %v515
  %525 = vmatprep.subr.mxu0 0.0
  %526 = vmatpush1.msra.mxu0 %v514
  %527 = vmatprep.subr.mxu0 0.0
  %528 = vmatpush1.msra.mxu0 %v513
  %529 = vmatprep.subr.mxu0 0.0
  %530 = vmatpush1.msra.mxu0 %v512
  %531 = vmatprep.subr.mxu0 0.0
  %532 = vmatpush1.msra.mxu0 %v511
  %533 = vmatprep.subr.mxu0 0.0
  %534 = vmatpush1.msra.mxu0 %v510
  %535 = vmatprep.subr.mxu0 0.0
  %536 = vmatpush1.msra.mxu0 %v509
  %537 = vmatprep.subr.mxu0 0.0
  %538 = vmatpush1.msra.mxu0 %v508
  %539 = vmatprep.subr.mxu0 0.0
  %540 = vmatpush1.msra.mxu0 %v507
  %541 = vmatprep.subr.mxu0 0.0
  %542 = vmatpush1.msra.mxu0 %v506
  %543 = vmatprep.subr.mxu0 0.0
  %544 = vmatpush1.msra.mxu0 %v505
  %545 = vmatprep.subr.mxu0 0.0
  %546 = vmatpush1.msra.mxu0 %v504
  %547 = vmatprep.subr.mxu0 0.0
  %548 = vmatpush1.msra.mxu0 %v503
  %549 = vmatprep.subr.mxu0 0.0
  %550 = vmatpush1.msra.mxu0 %v502
  %551 = vmatprep.subr.mxu0 0.0
  %552 = vmatpush1.msra.mxu0 %v501
  %553 = vmatprep.subr.mxu0 0.0
  %554 = vmatpush2.msra.mxu0 0.0
  %555 = vmatprep.subr.mxu0 0.0
  %556 = vmatpush2.msra.mxu0 0.0
  %557 = vmatprep.subr.mxu0 0.0
  %558 = vmatpush2.msra.mxu0 0.0
  %559 = vmatprep.subr.mxu0 0.0
  %560 = vmatpush2.msra.mxu0 0.0
  %561 = vmatprep.subr.mxu0 0.0
  %562 = vmatpush2.msra.mxu0 0.0
  %563 = vmatprep.subr.mxu0 0.0
  %564 = vmatpush2.msra.mxu0 0.0
  %565 = vmatprep.subr.mxu0 0.0
  %566 = vmatpush2.msra.mxu0 0.0
  %567 = vmatprep.subr.mxu0 0.0
  %568 = vmatpush2.msra.mxu0 0.0
  %569 = vmatprep.subr.mxu0 0.0
  %570 = vmatpush2.msra.mxu0 0.0
  %571 = vmatprep.subr.mxu0 0.0
  %572 = vmatpush2.msra.mxu0 0.0
  %573 = vmatprep.subr.mxu0 0.0
  %574 = vmatpush2.msra.mxu0 0.0
  %575 = vmatprep.subr.mxu0 0.0
  %576 = vmatpush2.msra.mxu0 0.0
  %577 = vmatprep.subr.mxu0 0.0
  %578 = vmatpush2.msra.mxu0 0.0
  %579 = vmatprep.subr.mxu0 0.0
  %580 = vmatpush2.msra.mxu0 0.0
  %581 = vmatprep.subr.mxu0 0.0
  %582 = vmatpush2.msra.mxu0 0.0
  %583 = vmatprep.subr.mxu0 0.0
  %584 = vmatpush2.msra.mxu0 0.0
  %585 = vmatprep.mubr.f32.mxu0 0.0
  %586 = vmatmul.mubr.f32.gmra.mxu0 %v483
  %v587 = vpop.f32.mrf.mxu0
  %v588 = vadd.f32 %v520, %v587
  %v589 = vpop.f32.mrf.mxu0
  %590 = vmatprep.mubr.f32.mxu0 0.0
  %591 = vmatmul.mubr.f32.gmra.mxu0 %v488
  %v592 = vpop.f32.mrf.mxu0
  %v593 = vadd.f32 %v520, %v592
  %v594 = vpop.f32.mrf.mxu0
  %595 = vmatprep.mubr.f32.mxu0 0.0
  %596 = vmatmul.mubr.f32.gmra.mxu0 %v493
  %v597 = vpop.f32.mrf.mxu0
  %v598 = vadd.f32 %v520, %v597
  %v599 = vpop.f32.mrf.mxu0
  %600 = vmatprep.mubr.f32.mxu0 0.0
  %601 = vmatmul.mubr.f32.gmra.mxu0 %v498
  %v602 = vpop.f32.mrf.mxu0
  %v603 = vadd.f32 %v520, %v602
  %v604 = vpop.f32.mrf.mxu0
  %605 = vdwg.mxu0
  %v606 = vmul.f32 %v588, %v198
  %v607 = vmul.f32 %v593, %v199
  %v608 = vmul.f32 %v598, %v200
  %v609 = vmul.f32 %v603, %v201
  %v610 = vmax.f32 %v606, 0.0
  %v611 = vmax.f32 %v607, 0.0
  %v612 = vmax.f32 %v608, 0.0
  %v613 = vmax.f32 %v609, 0.0
  %v614 = vld [vmem:[%s6] sm:$0xff]
  %v615 = vld [vmem:[%s6 + $0x8] sm:$0xff]
  %v616 = vld [vmem:[%s6 + $0x10] sm:$0xff]
  %v617 = vld [vmem:[%s6 + $0x18] sm:$0xff]
  %v618 = vld [vmem:[%s6 + $0x20] sm:$0xff]
  %v619 = vld [vmem:[%s6 + $0x28] sm:$0xff]
  %v620 = vld [vmem:[%s6 + $0x30] sm:$0xff]
  %v621 = vld [vmem:[%s6 + $0x38] sm:$0xff]
  %v622 = vld [vmem:[%s6 + $0x40] sm:$0xff]
  %v623 = vld [vmem:[%s6 + $0x48] sm:$0xff]
  %v624 = vld [vmem:[%s6 + $0x50] sm:$0xff]
  %v625 = vld [vmem:[%s6 + $0x58] sm:$0xff]
  %v626 = vld [vmem:[%s6 + $0x60] sm:$0xff]
  %v627 = vld [vmem:[%s6 + $0x68] sm:$0xff]
  %v628 = vld [vmem:[%s6 + $0x70] sm:$0xff]
  %v629 = vld [vmem:[%s6 + $0x78] sm:$0xff]
  %v630 = vlaneseq
  %v631 = vshrl.u32 %v630, 7
  %v632 = vsub.s32 0, %v631
  %v633 = vrot.slane %v50, %v632
  %634 = vmatprep.subr.mxu0 0.0
  %635 = vmatpush1.msra.mxu0 %v629
  %636 = vmatprep.subr.mxu0 0.0
  %637 = vmatpush1.msra.mxu0 %v628
  %638 = vmatprep.subr.mxu0 0.0
  %639 = vmatpush1.msra.mxu0 %v627
  %640 = vmatprep.subr.mxu0 0.0
  %641 = vmatpush1.msra.mxu0 %v626
  %642 = vmatprep.subr.mxu0 0.0
  %643 = vmatpush1.msra.mxu0 %v625
  %644 = vmatprep.subr.mxu0 0.0
  %645 = vmatpush1.msra.mxu0 %v624
  %646 = vmatprep.subr.mxu0 0.0
  %647 = vmatpush1.msra.mxu0 %v623
  %648 = vmatprep.subr.mxu0 0.0
  %649 = vmatpush1.msra.mxu0 %v622
  %650 = vmatprep.subr.mxu0 0.0
  %651 = vmatpush1.msra.mxu0 %v621
  %652 = vmatprep.subr.mxu0 0.0
  %653 = vmatpush1.msra.mxu0 %v620
  %654 = vmatprep.subr.mxu0 0.0
  %655 = vmatpush1.msra.mxu0 %v619
  %656 = vmatprep.subr.mxu0 0.0
  %657 = vmatpush1.msra.mxu0 %v618
  %658 = vmatprep.subr.mxu0 0.0
  %659 = vmatpush1.msra.mxu0 %v617
  %660 = vmatprep.subr.mxu0 0.0
  %661 = vmatpush1.msra.mxu0 %v616
  %662 = vmatprep.subr.mxu0 0.0
  %663 = vmatpush1.msra.mxu0 %v615
  %664 = vmatprep.subr.mxu0 0.0
  %665 = vmatpush1.msra.mxu0 %v614
  %666 = vmatprep.subr.mxu0 0.0
  %667 = vmatpush2.msra.mxu0 0.0
  %668 = vmatprep.subr.mxu0 0.0
  %669 = vmatpush2.msra.mxu0 0.0
  %670 = vmatprep.subr.mxu0 0.0
  %671 = vmatpush2.msra.mxu0 0.0
  %672 = vmatprep.subr.mxu0 0.0
  %673 = vmatpush2.msra.mxu0 0.0
  %674 = vmatprep.subr.mxu0 0.0
  %675 = vmatpush2.msra.mxu0 0.0
  %676 = vmatprep.subr.mxu0 0.0
  %677 = vmatpush2.msra.mxu0 0.0
  %678 = vmatprep.subr.mxu0 0.0
  %679 = vmatpush2.msra.mxu0 0.0
  %680 = vmatprep.subr.mxu0 0.0
  %681 = vmatpush2.msra.mxu0 0.0
  %682 = vmatprep.subr.mxu0 0.0
  %683 = vmatpush2.msra.mxu0 0.0
  %684 = vmatprep.subr.mxu0 0.0
  %685 = vmatpush2.msra.mxu0 0.0
  %686 = vmatprep.subr.mxu0 0.0
  %687 = vmatpush2.msra.mxu0 0.0
  %688 = vmatprep.subr.mxu0 0.0
  %689 = vmatpush2.msra.mxu0 0.0
  %690 = vmatprep.subr.mxu0 0.0
  %691 = vmatpush2.msra.mxu0 0.0
  %692 = vmatprep.subr.mxu0 0.0
  %693 = vmatpush2.msra.mxu0 0.0
  %694 = vmatprep.subr.mxu0 0.0
  %695 = vmatpush2.msra.mxu0 0.0
  %696 = vmatprep.subr.mxu0 0.0
  %697 = vmatpush2.msra.mxu0 0.0
  %698 = vmatprep.mubr.f32.mxu0 0.0
  %699 = vmatmul.mubr.f32.gmra.mxu0 %v610
  %v700 = vpop.f32.mrf.mxu0
  %v701 = vadd.f32 %v633, %v700
  %v702 = vpop.f32.mrf.mxu0
  %703 = vmatprep.mubr.f32.mxu0 0.0
  %704 = vmatmul.mubr.f32.gmra.mxu0 %v611
  %v705 = vpop.f32.mrf.mxu0
  %v706 = vadd.f32 %v633, %v705
  %v707 = vpop.f32.mrf.mxu0
  %708 = vmatprep.mubr.f32.mxu0 0.0
  %709 = vmatmul.mubr.f32.gmra.mxu0 %v612
  %v710 = vpop.f32.mrf.mxu0
  %v711 = vadd.f32 %v633, %v710
  %v712 = vpop.f32.mrf.mxu0
  %713 = vmatprep.mubr.f32.mxu0 0.0
  %714 = vmatmul.mubr.f32.gmra.mxu0 %v613
  %v715 = vpop.f32.mrf.mxu0
  %v716 = vadd.f32 %v633, %v715
  %v717 = vpop.f32.mrf.mxu0
  %718 = vdwg.mxu0
  %v719 = vmax.f32 %v701, 0.0
  %v720 = vmax.f32 %v706, 0.0
  %v721 = vmax.f32 %v711, 0.0
  %v722 = vmax.f32 %v716, 0.0
  %v723 = vld [vmem:[%s7] sm:$0xff]
  %v724 = vld [vmem:[%s7 + $0x8] sm:$0xff]
  %v725 = vld [vmem:[%s7 + $0x10] sm:$0xff]
  %v726 = vld [vmem:[%s7 + $0x18] sm:$0xff]
  %v727 = vld [vmem:[%s7 + $0x20] sm:$0xff]
  %v728 = vld [vmem:[%s7 + $0x28] sm:$0xff]
  %v729 = vld [vmem:[%s7 + $0x30] sm:$0xff]
  %v730 = vld [vmem:[%s7 + $0x38] sm:$0xff]
  %v732 = vsel %vm53, %v719, 0
  %v735 = vsel %vm53, %v720, 0
  %v738 = vsel %vm53, %v721, 0
  %v741 = vsel %vm53, %v722, 0
  %743 = vmatprep.subr.mxu0 0.0
  %744 = vmatpush1.msra.mxu0 0.0
  %745 = vmatprep.subr.mxu0 0.0
  %746 = vmatpush1.msra.mxu0 0.0
  %747 = vmatprep.subr.mxu0 0.0
  %748 = vmatpush1.msra.mxu0 0.0
  %749 = vmatprep.subr.mxu0 0.0
  %750 = vmatpush1.msra.mxu0 0.0
  %751 = vmatprep.subr.mxu0 0.0
  %752 = vmatpush1.msra.mxu0 0.0
  %753 = vmatprep.subr.mxu0 0.0
  %754 = vmatpush1.msra.mxu0 0.0
  %755 = vmatprep.subr.mxu0 0.0
  %756 = vmatpush1.msra.mxu0 0.0
  %757 = vmatprep.subr.mxu0 0.0
  %758 = vmatpush1.msra.mxu0 0.0
  %759 = vmatprep.subr.mxu0 0.0
  %760 = vmatpush1.msra.mxu0 %v730
  %761 = vmatprep.subr.mxu0 0.0
  %762 = vmatpush1.msra.mxu0 %v729
  %763 = vmatprep.subr.mxu0 0.0
  %764 = vmatpush1.msra.mxu0 %v728
  %765 = vmatprep.subr.mxu0 0.0
  %766 = vmatpush1.msra.mxu0 %v727
  %767 = vmatprep.subr.mxu0 0.0
  %768 = vmatpush1.msra.mxu0 %v726
  %769 = vmatprep.subr.mxu0 0.0
  %770 = vmatpush1.msra.mxu0 %v725
  %771 = vmatprep.subr.mxu0 0.0
  %772 = vmatpush1.msra.mxu0 %v724
  %773 = vmatprep.subr.mxu0 0.0
  %774 = vmatpush1.msra.mxu0 %v723
  %775 = vmatprep.subr.mxu0 0.0
  %776 = vmatpush2.msra.mxu0 0.0
  %777 = vmatprep.subr.mxu0 0.0
  %778 = vmatpush2.msra.mxu0 0.0
  %779 = vmatprep.subr.mxu0 0.0
  %780 = vmatpush2.msra.mxu0 0.0
  %781 = vmatprep.subr.mxu0 0.0
  %782 = vmatpush2.msra.mxu0 0.0
  %783 = vmatprep.subr.mxu0 0.0
  %784 = vmatpush2.msra.mxu0 0.0
  %785 = vmatprep.subr.mxu0 0.0
  %786 = vmatpush2.msra.mxu0 0.0
  %787 = vmatprep.subr.mxu0 0.0
  %788 = vmatpush2.msra.mxu0 0.0
  %789 = vmatprep.subr.mxu0 0.0
  %790 = vmatpush2.msra.mxu0 0.0
  %791 = vmatprep.subr.mxu0 0.0
  %792 = vmatpush2.msra.mxu0 0.0
  %793 = vmatprep.subr.mxu0 0.0
  %794 = vmatpush2.msra.mxu0 0.0
  %795 = vmatprep.subr.mxu0 0.0
  %796 = vmatpush2.msra.mxu0 0.0
  %797 = vmatprep.subr.mxu0 0.0
  %798 = vmatpush2.msra.mxu0 0.0
  %799 = vmatprep.subr.mxu0 0.0
  %800 = vmatpush2.msra.mxu0 0.0
  %801 = vmatprep.subr.mxu0 0.0
  %802 = vmatpush2.msra.mxu0 0.0
  %803 = vmatprep.subr.mxu0 0.0
  %804 = vmatpush2.msra.mxu0 0.0
  %805 = vmatprep.subr.mxu0 0.0
  %806 = vmatpush2.msra.mxu0 0.0
  %807 = vmatprep.mubr.f32.mxu0 0.0
  %808 = vmatmul.mubr.f32.gmra.mxu0 %v732
  %v809 = vpop.f32.mrf.mxu0
  %v810 = vadd.f32 0.0, %v809
  %v811 = vpop.f32.mrf.mxu0
  %812 = vmatprep.mubr.f32.mxu0 0.0
  %813 = vmatmul.mubr.f32.gmra.mxu0 %v735
  %v814 = vpop.f32.mrf.mxu0
  %v815 = vadd.f32 0.0, %v814
  %v816 = vpop.f32.mrf.mxu0
  %817 = vmatprep.mubr.f32.mxu0 0.0
  %818 = vmatmul.mubr.f32.gmra.mxu0 %v738
  %v819 = vpop.f32.mrf.mxu0
  %v820 = vadd.f32 0.0, %v819
  %v821 = vpop.f32.mrf.mxu0
  %822 = vmatprep.mubr.f32.mxu0 0.0
  %823 = vmatmul.mubr.f32.gmra.mxu0 %v741
  %v824 = vpop.f32.mrf.mxu0
  %v825 = vadd.f32 0.0, %v824
  %v826 = vpop.f32.mrf.mxu0
  %827 = vdwg.mxu0
  %v828 = vlaneseq
  %v829 = vand.u32 %v828, 127
  %v830 = vshra.s32 %v128, 4
  %v831 = vshra.s32 %v134, 4
  %v832 = vshra.s32 %v135, 4
  %v833 = vshra.s32 %v136, 4
  %v834 = vshra.s32 %v829, 4
  %vm835 = vcmp.eq.s32.totalorder %v830, %v834
  %vm836 = vcmp.eq.s32.totalorder %v831, %v834
  %vm837 = vcmp.eq.s32.totalorder %v832, %v834
  %vm838 = vcmp.eq.s32.totalorder %v833, %v834
  %v839 = vsel %vm835, 0.0, -1e+30
  %v840 = vsel %vm836, 0.0, -1e+30
  %v841 = vsel %vm837, 0.0, -1e+30
  %v842 = vsel %vm838, 0.0, -1e+30
  %843 = vrot.lane.b32.xlu0 %v719, 96
  %v844 = vpop.permute.xlu0 %843
  %845 = vrot.lane.b32.xlu0 %v720, 96
  %v846 = vpop.permute.xlu0 %845
  %847 = vrot.lane.b32.xlu0 %v721, 96
  %v848 = vpop.permute.xlu0 %847
  %849 = vrot.lane.b32.xlu0 %v722, 96
  %v850 = vpop.permute.xlu0 %849
  %v852 = vsel %vm181, %v810, 0
  %v855 = vsel %vm181, %v815, 0
  %v858 = vsel %vm181, %v820, 0
  %v861 = vsel %vm181, %v825, 0
  %v863 = vsel %vm181, %v844, 0
  %v865 = vsel %vm181, %v846, 0
  %v867 = vsel %vm181, %v848, 0
  %v869 = vsel %vm181, %v850, 0
  %871 = vmatprep.subr.mxu0 0.0
  %872 = vmatpush1.xpose.msra.mxu0 0.0
  %873 = vmatprep.subr.mxu0 0.0
  %874 = vmatpush1.xpose.msra.mxu0 0.0
  %875 = vmatprep.subr.mxu0 0.0
  %876 = vmatpush1.xpose.msra.mxu0 0.0
  %877 = vmatprep.subr.mxu0 0.0
  %878 = vmatpush1.xpose.msra.mxu0 0.0
  %879 = vmatprep.subr.mxu0 0.0
  %880 = vmatpush1.xpose.msra.mxu0 0.0
  %881 = vmatprep.subr.mxu0 0.0
  %882 = vmatpush1.xpose.msra.mxu0 0.0
  %883 = vmatprep.subr.mxu0 0.0
  %884 = vmatpush1.xpose.msra.mxu0 0.0
  %885 = vmatprep.subr.mxu0 0.0
  %886 = vmatpush1.xpose.msra.mxu0 0.0
  %887 = vmatprep.subr.mxu0 0.0
  %888 = vmatpush1.xpose.msra.mxu0 0.0
  %889 = vmatprep.subr.mxu0 0.0
  %890 = vmatpush1.xpose.msra.mxu0 0.0
  %891 = vmatprep.subr.mxu0 0.0
  %892 = vmatpush1.xpose.msra.mxu0 0.0
  %893 = vmatprep.subr.mxu0 0.0
  %894 = vmatpush1.xpose.msra.mxu0 0.0
  %895 = vmatprep.subr.mxu0 0.0
  %896 = vmatpush1.xpose.msra.mxu0 %v869
  %897 = vmatprep.subr.mxu0 0.0
  %898 = vmatpush1.xpose.msra.mxu0 %v867
  %899 = vmatprep.subr.mxu0 0.0
  %900 = vmatpush1.xpose.msra.mxu0 %v865
  %901 = vmatprep.subr.mxu0 0.0
  %902 = vmatpush1.xpose.msra.mxu0 %v863
  %903 = vmatprep.subr.mxu0 0.0
  %904 = vmatpush2.xpose.msra.mxu0 0.0
  %905 = vmatprep.subr.mxu0 0.0
  %906 = vmatpush2.xpose.msra.mxu0 0.0
  %907 = vmatprep.subr.mxu0 0.0
  %908 = vmatpush2.xpose.msra.mxu0 0.0
  %909 = vmatprep.subr.mxu0 0.0
  %910 = vmatpush2.xpose.msra.mxu0 0.0
  %911 = vmatprep.subr.mxu0 0.0
  %912 = vmatpush2.xpose.msra.mxu0 0.0
  %913 = vmatprep.subr.mxu0 0.0
  %914 = vmatpush2.xpose.msra.mxu0 0.0
  %915 = vmatprep.subr.mxu0 0.0
  %916 = vmatpush2.xpose.msra.mxu0 0.0
  %917 = vmatprep.subr.mxu0 0.0
  %918 = vmatpush2.xpose.msra.mxu0 0.0
  %919 = vmatprep.subr.mxu0 0.0
  %920 = vmatpush2.xpose.msra.mxu0 0.0
  %921 = vmatprep.subr.mxu0 0.0
  %922 = vmatpush2.xpose.msra.mxu0 0.0
  %923 = vmatprep.subr.mxu0 0.0
  %924 = vmatpush2.xpose.msra.mxu0 0.0
  %925 = vmatprep.subr.mxu0 0.0
  %926 = vmatpush2.xpose.msra.mxu0 0.0
  %927 = vmatprep.subr.mxu0 0.0
  %928 = vmatpush2.xpose.msra.mxu0 0.0
  %929 = vmatprep.subr.mxu0 0.0
  %930 = vmatpush2.xpose.msra.mxu0 0.0
  %931 = vmatprep.subr.mxu0 0.0
  %932 = vmatpush2.xpose.msra.mxu0 0.0
  %933 = vmatprep.subr.mxu0 0.0
  %934 = vmatpush2.xpose.msra.mxu0 0.0
  %935 = vmatprep.mubr.f32.mxu0 0.0
  %936 = vmatmul.mubr.f32.gmra.mxu0 %v852
  %v937 = vpop.f32.mrf.mxu0
  %v938 = vadd.f32 %v839, %v937
  %v939 = vpop.f32.mrf.mxu0
  %940 = vmatprep.mubr.f32.mxu0 0.0
  %941 = vmatmul.mubr.f32.gmra.mxu0 %v855
  %v942 = vpop.f32.mrf.mxu0
  %v943 = vadd.f32 %v840, %v942
  %v944 = vpop.f32.mrf.mxu0
  %945 = vmatprep.mubr.f32.mxu0 0.0
  %946 = vmatmul.mubr.f32.gmra.mxu0 %v858
  %v947 = vpop.f32.mrf.mxu0
  %v948 = vadd.f32 %v841, %v947
  %v949 = vpop.f32.mrf.mxu0
  %950 = vmatprep.mubr.f32.mxu0 0.0
  %951 = vmatmul.mubr.f32.gmra.mxu0 %v861
  %v952 = vpop.f32.mrf.mxu0
  %v953 = vadd.f32 %v842, %v952
  %v954 = vpop.f32.mrf.mxu0
  %955 = vdwg.mxu0
  %v956 = vsel %vm181, %v938, -inf
  %957 = vmax.xlane.f32.xlu0 %v956
  %v958 = vpop.xlane.xlu0 %957
  %v959 = vsel %vm181, %v943, -inf
  %960 = vmax.xlane.f32.xlu0 %v959
  %v961 = vpop.xlane.xlu0 %960
  %v962 = vsel %vm181, %v948, -inf
  %963 = vmax.xlane.f32.xlu0 %v962
  %v964 = vpop.xlane.xlu0 %963
  %v965 = vsel %vm181, %v953, -inf
  %966 = vmax.xlane.f32.xlu0 %v965
  %v967 = vpop.xlane.xlu0 %966
  %v968 = vsub.f32 %v938, %v958
  %v969 = vsub.f32 %v943, %v961
  %v970 = vsub.f32 %v948, %v964
  %v971 = vsub.f32 %v953, %v967
  %v972 = vmul.f32 %v968, 1.442695
  %v973 = vpow.pop %v972
  %v974 = vmul.f32 %v969, 1.442695
  %v975 = vpow.pop %v974
  %v976 = vmul.f32 %v970, 1.442695
  %v977 = vpow.pop %v976
  %v978 = vmul.f32 %v971, 1.442695
  %v979 = vpow.pop %v978
  %v980 = vsel %vm181, %v973, 0.0
  %981 = vadd.xlane.f32.xlu0 %v980
  %v982 = vpop.xlane.xlu0 %981
  %v983 = vsel %vm181, %v975, 0.0
  %984 = vadd.xlane.f32.xlu0 %v983
  %v985 = vpop.xlane.xlu0 %984
  %v986 = vsel %vm181, %v977, 0.0
  %987 = vadd.xlane.f32.xlu0 %v986
  %v988 = vpop.xlane.xlu0 %987
  %v989 = vsel %vm181, %v979, 0.0
  %990 = vadd.xlane.f32.xlu0 %v989
  %v991 = vpop.xlane.xlu0 %990
  %v992 = vrcp.pop %v982
  %v993 = vrcp.pop %v985
  %v994 = vrcp.pop %v988
  %v995 = vrcp.pop %v991
  %v996 = vmul.f32 %v973, %v992
  %v997 = vmul.f32 %v975, %v993
  %v998 = vmul.f32 %v977, %v994
  %v999 = vmul.f32 %v979, %v995
  %v1005 = vsel %vm181, %v996, 0
  %v1008 = vsel %vm181, %v997, 0
  %v1011 = vsel %vm181, %v998, 0
  %v1014 = vsel %vm181, %v999, 0
  %1016 = vmatprep.subr.mxu0 0.0
  %1017 = vmatpush1.msra.mxu0 0.0
  %1018 = vmatprep.subr.mxu0 0.0
  %1019 = vmatpush1.msra.mxu0 0.0
  %1020 = vmatprep.subr.mxu0 0.0
  %1021 = vmatpush1.msra.mxu0 0.0
  %1022 = vmatprep.subr.mxu0 0.0
  %1023 = vmatpush1.msra.mxu0 0.0
  %1024 = vmatprep.subr.mxu0 0.0
  %1025 = vmatpush1.msra.mxu0 0.0
  %1026 = vmatprep.subr.mxu0 0.0
  %1027 = vmatpush1.msra.mxu0 0.0
  %1028 = vmatprep.subr.mxu0 0.0
  %1029 = vmatpush1.msra.mxu0 0.0
  %1030 = vmatprep.subr.mxu0 0.0
  %1031 = vmatpush1.msra.mxu0 0.0
  %1032 = vmatprep.subr.mxu0 0.0
  %1033 = vmatpush1.msra.mxu0 0.0
  %1034 = vmatprep.subr.mxu0 0.0
  %1035 = vmatpush1.msra.mxu0 0.0
  %1036 = vmatprep.subr.mxu0 0.0
  %1037 = vmatpush1.msra.mxu0 0.0
  %1038 = vmatprep.subr.mxu0 0.0
  %1039 = vmatpush1.msra.mxu0 0.0
  %1040 = vmatprep.subr.mxu0 0.0
  %1041 = vmatpush1.msra.mxu0 %v850
  %1042 = vmatprep.subr.mxu0 0.0
  %1043 = vmatpush1.msra.mxu0 %v848
  %1044 = vmatprep.subr.mxu0 0.0
  %1045 = vmatpush1.msra.mxu0 %v846
  %1046 = vmatprep.subr.mxu0 0.0
  %1047 = vmatpush1.msra.mxu0 %v844
  %1048 = vmatprep.subr.mxu0 0.0
  %1049 = vmatpush2.msra.mxu0 0.0
  %1050 = vmatprep.subr.mxu0 0.0
  %1051 = vmatpush2.msra.mxu0 0.0
  %1052 = vmatprep.subr.mxu0 0.0
  %1053 = vmatpush2.msra.mxu0 0.0
  %1054 = vmatprep.subr.mxu0 0.0
  %1055 = vmatpush2.msra.mxu0 0.0
  %1056 = vmatprep.subr.mxu0 0.0
  %1057 = vmatpush2.msra.mxu0 0.0
  %1058 = vmatprep.subr.mxu0 0.0
  %1059 = vmatpush2.msra.mxu0 0.0
  %1060 = vmatprep.subr.mxu0 0.0
  %1061 = vmatpush2.msra.mxu0 0.0
  %1062 = vmatprep.subr.mxu0 0.0
  %1063 = vmatpush2.msra.mxu0 0.0
  %1064 = vmatprep.subr.mxu0 0.0
  %1065 = vmatpush2.msra.mxu0 0.0
  %1066 = vmatprep.subr.mxu0 0.0
  %1067 = vmatpush2.msra.mxu0 0.0
  %1068 = vmatprep.subr.mxu0 0.0
  %1069 = vmatpush2.msra.mxu0 0.0
  %1070 = vmatprep.subr.mxu0 0.0
  %1071 = vmatpush2.msra.mxu0 0.0
  %1072 = vmatprep.subr.mxu0 0.0
  %1073 = vmatpush2.msra.mxu0 0.0
  %1074 = vmatprep.subr.mxu0 0.0
  %1075 = vmatpush2.msra.mxu0 0.0
  %1076 = vmatprep.subr.mxu0 0.0
  %1077 = vmatpush2.msra.mxu0 0.0
  %1078 = vmatprep.subr.mxu0 0.0
  %1079 = vmatpush2.msra.mxu0 0.0
  %1080 = vmatprep.mubr.f32.mxu0 0.0
  %1081 = vmatmul.mubr.f32.gmra.mxu0 %v1005
  %v1082 = vpop.f32.mrf.mxu0
  %v1083 = vadd.f32 0.0, %v1082
  %v1084 = vpop.f32.mrf.mxu0
  %1085 = vmatprep.mubr.f32.mxu0 0.0
  %1086 = vmatmul.mubr.f32.gmra.mxu0 %v1008
  %v1087 = vpop.f32.mrf.mxu0
  %v1088 = vadd.f32 0.0, %v1087
  %v1089 = vpop.f32.mrf.mxu0
  %1090 = vmatprep.mubr.f32.mxu0 0.0
  %1091 = vmatmul.mubr.f32.gmra.mxu0 %v1011
  %v1092 = vpop.f32.mrf.mxu0
  %v1093 = vadd.f32 0.0, %v1092
  %v1094 = vpop.f32.mrf.mxu0
  %1095 = vmatprep.mubr.f32.mxu0 0.0
  %1096 = vmatmul.mubr.f32.gmra.mxu0 %v1014
  %v1097 = vpop.f32.mrf.mxu0
  %v1098 = vadd.f32 0.0, %v1097
  %v1099 = vpop.f32.mrf.mxu0
  %1100 = vdwg.mxu0
  %1101 = vrot.lane.b32.xlu0 %v810, 96
  %v1102 = vpop.permute.xlu0 %1101
  %1103 = vrot.lane.b32.xlu0 %v815, 96
  %v1104 = vpop.permute.xlu0 %1103
  %1105 = vrot.lane.b32.xlu0 %v820, 96
  %v1106 = vpop.permute.xlu0 %1105
  %1107 = vrot.lane.b32.xlu0 %v825, 96
  %v1108 = vpop.permute.xlu0 %1107
  %v1109 = vsel %vm181, %v1102, 0
  %v1111 = vsel %vm181, %v1104, 0
  %v1113 = vsel %vm181, %v1106, 0
  %v1115 = vsel %vm181, %v1108, 0
  %v1117 = vsel %vm181, %v719, 0
  %v1119 = vsel %vm181, %v720, 0
  %v1121 = vsel %vm181, %v721, 0
  %v1123 = vsel %vm181, %v722, 0
  %1125 = vmatprep.subr.mxu0 0.0
  %1126 = vmatpush1.xpose.msra.mxu0 0.0
  %1127 = vmatprep.subr.mxu0 0.0
  %1128 = vmatpush1.xpose.msra.mxu0 0.0
  %1129 = vmatprep.subr.mxu0 0.0
  %1130 = vmatpush1.xpose.msra.mxu0 0.0
  %1131 = vmatprep.subr.mxu0 0.0
  %1132 = vmatpush1.xpose.msra.mxu0 0.0
  %1133 = vmatprep.subr.mxu0 0.0
  %1134 = vmatpush1.xpose.msra.mxu0 0.0
  %1135 = vmatprep.subr.mxu0 0.0
  %1136 = vmatpush1.xpose.msra.mxu0 0.0
  %1137 = vmatprep.subr.mxu0 0.0
  %1138 = vmatpush1.xpose.msra.mxu0 0.0
  %1139 = vmatprep.subr.mxu0 0.0
  %1140 = vmatpush1.xpose.msra.mxu0 0.0
  %1141 = vmatprep.subr.mxu0 0.0
  %1142 = vmatpush1.xpose.msra.mxu0 0.0
  %1143 = vmatprep.subr.mxu0 0.0
  %1144 = vmatpush1.xpose.msra.mxu0 0.0
  %1145 = vmatprep.subr.mxu0 0.0
  %1146 = vmatpush1.xpose.msra.mxu0 0.0
  %1147 = vmatprep.subr.mxu0 0.0
  %1148 = vmatpush1.xpose.msra.mxu0 0.0
  %1149 = vmatprep.subr.mxu0 0.0
  %1150 = vmatpush1.xpose.msra.mxu0 %v1123
  %1151 = vmatprep.subr.mxu0 0.0
  %1152 = vmatpush1.xpose.msra.mxu0 %v1121
  %1153 = vmatprep.subr.mxu0 0.0
  %1154 = vmatpush1.xpose.msra.mxu0 %v1119
  %1155 = vmatprep.subr.mxu0 0.0
  %1156 = vmatpush1.xpose.msra.mxu0 %v1117
  %1157 = vmatprep.subr.mxu0 0.0
  %1158 = vmatpush2.xpose.msra.mxu0 0.0
  %1159 = vmatprep.subr.mxu0 0.0
  %1160 = vmatpush2.xpose.msra.mxu0 0.0
  %1161 = vmatprep.subr.mxu0 0.0
  %1162 = vmatpush2.xpose.msra.mxu0 0.0
  %1163 = vmatprep.subr.mxu0 0.0
  %1164 = vmatpush2.xpose.msra.mxu0 0.0
  %1165 = vmatprep.subr.mxu0 0.0
  %1166 = vmatpush2.xpose.msra.mxu0 0.0
  %1167 = vmatprep.subr.mxu0 0.0
  %1168 = vmatpush2.xpose.msra.mxu0 0.0
  %1169 = vmatprep.subr.mxu0 0.0
  %1170 = vmatpush2.xpose.msra.mxu0 0.0
  %1171 = vmatprep.subr.mxu0 0.0
  %1172 = vmatpush2.xpose.msra.mxu0 0.0
  %1173 = vmatprep.subr.mxu0 0.0
  %1174 = vmatpush2.xpose.msra.mxu0 0.0
  %1175 = vmatprep.subr.mxu0 0.0
  %1176 = vmatpush2.xpose.msra.mxu0 0.0
  %1177 = vmatprep.subr.mxu0 0.0
  %1178 = vmatpush2.xpose.msra.mxu0 0.0
  %1179 = vmatprep.subr.mxu0 0.0
  %1180 = vmatpush2.xpose.msra.mxu0 0.0
  %1181 = vmatprep.subr.mxu0 0.0
  %1182 = vmatpush2.xpose.msra.mxu0 0.0
  %1183 = vmatprep.subr.mxu0 0.0
  %1184 = vmatpush2.xpose.msra.mxu0 0.0
  %1185 = vmatprep.subr.mxu0 0.0
  %1186 = vmatpush2.xpose.msra.mxu0 0.0
  %1187 = vmatprep.subr.mxu0 0.0
  %1188 = vmatpush2.xpose.msra.mxu0 0.0
  %1189 = vmatprep.mubr.f32.mxu0 0.0
  %1190 = vmatmul.mubr.f32.gmra.mxu0 %v1109
  %v1191 = vpop.f32.mrf.mxu0
  %v1192 = vadd.f32 %v839, %v1191
  %v1193 = vpop.f32.mrf.mxu0
  %1194 = vmatprep.mubr.f32.mxu0 0.0
  %1195 = vmatmul.mubr.f32.gmra.mxu0 %v1111
  %v1196 = vpop.f32.mrf.mxu0
  %v1197 = vadd.f32 %v840, %v1196
  %v1198 = vpop.f32.mrf.mxu0
  %1199 = vmatprep.mubr.f32.mxu0 0.0
  %1200 = vmatmul.mubr.f32.gmra.mxu0 %v1113
  %v1201 = vpop.f32.mrf.mxu0
  %v1202 = vadd.f32 %v841, %v1201
  %v1203 = vpop.f32.mrf.mxu0
  %1204 = vmatprep.mubr.f32.mxu0 0.0
  %1205 = vmatmul.mubr.f32.gmra.mxu0 %v1115
  %v1206 = vpop.f32.mrf.mxu0
  %v1207 = vadd.f32 %v842, %v1206
  %v1208 = vpop.f32.mrf.mxu0
  %1209 = vdwg.mxu0
  %v1210 = vsel %vm181, %v1192, -inf
  %1211 = vmax.xlane.f32.xlu0 %v1210
  %v1212 = vpop.xlane.xlu0 %1211
  %v1213 = vsel %vm181, %v1197, -inf
  %1214 = vmax.xlane.f32.xlu0 %v1213
  %v1215 = vpop.xlane.xlu0 %1214
  %v1216 = vsel %vm181, %v1202, -inf
  %1217 = vmax.xlane.f32.xlu0 %v1216
  %v1218 = vpop.xlane.xlu0 %1217
  %v1219 = vsel %vm181, %v1207, -inf
  %1220 = vmax.xlane.f32.xlu0 %v1219
  %v1221 = vpop.xlane.xlu0 %1220
  %v1222 = vsub.f32 %v1192, %v1212
  %v1223 = vsub.f32 %v1197, %v1215
  %v1224 = vsub.f32 %v1202, %v1218
  %v1225 = vsub.f32 %v1207, %v1221
  %v1226 = vmul.f32 %v1222, 1.442695
  %v1227 = vpow.pop %v1226
  %v1228 = vmul.f32 %v1223, 1.442695
  %v1229 = vpow.pop %v1228
  %v1230 = vmul.f32 %v1224, 1.442695
  %v1231 = vpow.pop %v1230
  %v1232 = vmul.f32 %v1225, 1.442695
  %v1233 = vpow.pop %v1232
  %v1234 = vsel %vm181, %v1227, 0.0
  %1235 = vadd.xlane.f32.xlu0 %v1234
  %v1236 = vpop.xlane.xlu0 %1235
  %v1237 = vsel %vm181, %v1229, 0.0
  %1238 = vadd.xlane.f32.xlu0 %v1237
  %v1239 = vpop.xlane.xlu0 %1238
  %v1240 = vsel %vm181, %v1231, 0.0
  %1241 = vadd.xlane.f32.xlu0 %v1240
  %v1242 = vpop.xlane.xlu0 %1241
  %v1243 = vsel %vm181, %v1233, 0.0
  %1244 = vadd.xlane.f32.xlu0 %v1243
  %v1245 = vpop.xlane.xlu0 %1244
  %v1246 = vrcp.pop %v1236
  %v1247 = vrcp.pop %v1239
  %v1248 = vrcp.pop %v1242
  %v1249 = vrcp.pop %v1245
  %v1250 = vmul.f32 %v1227, %v1246
  %v1251 = vmul.f32 %v1229, %v1247
  %v1252 = vmul.f32 %v1231, %v1248
  %v1253 = vmul.f32 %v1233, %v1249
  %v1255 = vsel %vm181, %v1250, 0
  %v1258 = vsel %vm181, %v1251, 0
  %v1261 = vsel %vm181, %v1252, 0
  %v1264 = vsel %vm181, %v1253, 0
  %1266 = vmatprep.subr.mxu0 0.0
  %1267 = vmatpush1.msra.mxu0 0.0
  %1268 = vmatprep.subr.mxu0 0.0
  %1269 = vmatpush1.msra.mxu0 0.0
  %1270 = vmatprep.subr.mxu0 0.0
  %1271 = vmatpush1.msra.mxu0 0.0
  %1272 = vmatprep.subr.mxu0 0.0
  %1273 = vmatpush1.msra.mxu0 0.0
  %1274 = vmatprep.subr.mxu0 0.0
  %1275 = vmatpush1.msra.mxu0 0.0
  %1276 = vmatprep.subr.mxu0 0.0
  %1277 = vmatpush1.msra.mxu0 0.0
  %1278 = vmatprep.subr.mxu0 0.0
  %1279 = vmatpush1.msra.mxu0 0.0
  %1280 = vmatprep.subr.mxu0 0.0
  %1281 = vmatpush1.msra.mxu0 0.0
  %1282 = vmatprep.subr.mxu0 0.0
  %1283 = vmatpush1.msra.mxu0 0.0
  %1284 = vmatprep.subr.mxu0 0.0
  %1285 = vmatpush1.msra.mxu0 0.0
  %1286 = vmatprep.subr.mxu0 0.0
  %1287 = vmatpush1.msra.mxu0 0.0
  %1288 = vmatprep.subr.mxu0 0.0
  %1289 = vmatpush1.msra.mxu0 0.0
  %1290 = vmatprep.subr.mxu0 0.0
  %1291 = vmatpush1.msra.mxu0 %v722
  %1292 = vmatprep.subr.mxu0 0.0
  %1293 = vmatpush1.msra.mxu0 %v721
  %1294 = vmatprep.subr.mxu0 0.0
  %1295 = vmatpush1.msra.mxu0 %v720
  %1296 = vmatprep.subr.mxu0 0.0
  %1297 = vmatpush1.msra.mxu0 %v719
  %1298 = vmatprep.subr.mxu0 0.0
  %1299 = vmatpush2.msra.mxu0 0.0
  %1300 = vmatprep.subr.mxu0 0.0
  %1301 = vmatpush2.msra.mxu0 0.0
  %1302 = vmatprep.subr.mxu0 0.0
  %1303 = vmatpush2.msra.mxu0 0.0
  %1304 = vmatprep.subr.mxu0 0.0
  %1305 = vmatpush2.msra.mxu0 0.0
  %1306 = vmatprep.subr.mxu0 0.0
  %1307 = vmatpush2.msra.mxu0 0.0
  %1308 = vmatprep.subr.mxu0 0.0
  %1309 = vmatpush2.msra.mxu0 0.0
  %1310 = vmatprep.subr.mxu0 0.0
  %1311 = vmatpush2.msra.mxu0 0.0
  %1312 = vmatprep.subr.mxu0 0.0
  %1313 = vmatpush2.msra.mxu0 0.0
  %1314 = vmatprep.subr.mxu0 0.0
  %1315 = vmatpush2.msra.mxu0 0.0
  %1316 = vmatprep.subr.mxu0 0.0
  %1317 = vmatpush2.msra.mxu0 0.0
  %1318 = vmatprep.subr.mxu0 0.0
  %1319 = vmatpush2.msra.mxu0 0.0
  %1320 = vmatprep.subr.mxu0 0.0
  %1321 = vmatpush2.msra.mxu0 0.0
  %1322 = vmatprep.subr.mxu0 0.0
  %1323 = vmatpush2.msra.mxu0 0.0
  %1324 = vmatprep.subr.mxu0 0.0
  %1325 = vmatpush2.msra.mxu0 0.0
  %1326 = vmatprep.subr.mxu0 0.0
  %1327 = vmatpush2.msra.mxu0 0.0
  %1328 = vmatprep.subr.mxu0 0.0
  %1329 = vmatpush2.msra.mxu0 0.0
  %1330 = vmatprep.mubr.f32.mxu0 0.0
  %1331 = vmatmul.mubr.f32.gmra.mxu0 %v1255
  %v1332 = vpop.f32.mrf.mxu0
  %v1333 = vadd.f32 0.0, %v1332
  %v1334 = vpop.f32.mrf.mxu0
  %1335 = vmatprep.mubr.f32.mxu0 0.0
  %1336 = vmatmul.mubr.f32.gmra.mxu0 %v1258
  %v1337 = vpop.f32.mrf.mxu0
  %v1338 = vadd.f32 0.0, %v1337
  %v1339 = vpop.f32.mrf.mxu0
  %1340 = vmatprep.mubr.f32.mxu0 0.0
  %1341 = vmatmul.mubr.f32.gmra.mxu0 %v1261
  %v1342 = vpop.f32.mrf.mxu0
  %v1343 = vadd.f32 0.0, %v1342
  %v1344 = vpop.f32.mrf.mxu0
  %1345 = vmatprep.mubr.f32.mxu0 0.0
  %1346 = vmatmul.mubr.f32.gmra.mxu0 %v1264
  %v1347 = vpop.f32.mrf.mxu0
  %v1348 = vadd.f32 0.0, %v1347
  %v1349 = vpop.f32.mrf.mxu0
  %1350 = vdwg.mxu0
  %1355 = vrot.lane.b32.xlu0 %v1333, 32
  %v1356 = vpop.permute.xlu0 %1355
  %1357 = vrot.lane.b32.xlu0 %v1338, 32
  %v1358 = vpop.permute.xlu0 %1357
  %1359 = vrot.lane.b32.xlu0 %v1343, 32
  %v1360 = vpop.permute.xlu0 %1359
  %1361 = vrot.lane.b32.xlu0 %v1348, 32
  %v1362 = vpop.permute.xlu0 %1361
  %v1367 = vsel %vm181, %v1083, %v1356
  %v1368 = vsel %vm181, %v1088, %v1358
  %v1369 = vsel %vm181, %v1093, %v1360
  %v1370 = vsel %vm181, %v1098, %v1362
  %v1371 = vld [vmem:[%s3] sm:$0x3]
  %vm1372 = vcmask 254976
  %v1373 = vsel %vm1372, %v1371, 0.0
  %1374 = vadd.xlane.f32.xlu0 %v1373
  %v1375 = vpop.xlane.xlu0 %1374
  %v1376 = vrcp.pop %v1375
  %v1378 = vsel %vm181, %v1371, 0
  %1380 = vmatprep.subr.mxu0 0.0
  %1381 = vmatpush1.msra.mxu0 0.0
  %1382 = vmatprep.subr.mxu0 0.0
  %1383 = vmatpush1.msra.mxu0 0.0
  %1384 = vmatprep.subr.mxu0 0.0
  %1385 = vmatpush1.msra.mxu0 0.0
  %1386 = vmatprep.subr.mxu0 0.0
  %1387 = vmatpush1.msra.mxu0 0.0
  %1388 = vmatprep.subr.mxu0 0.0
  %1389 = vmatpush1.msra.mxu0 0.0
  %1390 = vmatprep.subr.mxu0 0.0
  %1391 = vmatpush1.msra.mxu0 0.0
  %1392 = vmatprep.subr.mxu0 0.0
  %1393 = vmatpush1.msra.mxu0 0.0
  %1394 = vmatprep.subr.mxu0 0.0
  %1395 = vmatpush1.msra.mxu0 0.0
  %1396 = vmatprep.subr.mxu0 0.0
  %1397 = vmatpush1.msra.mxu0 0.0
  %1398 = vmatprep.subr.mxu0 0.0
  %1399 = vmatpush1.msra.mxu0 0.0
  %1400 = vmatprep.subr.mxu0 0.0
  %1401 = vmatpush1.msra.mxu0 0.0
  %1402 = vmatprep.subr.mxu0 0.0
  %1403 = vmatpush1.msra.mxu0 0.0
  %1404 = vmatprep.subr.mxu0 0.0
  %1405 = vmatpush1.msra.mxu0 %v1370
  %1406 = vmatprep.subr.mxu0 0.0
  %1407 = vmatpush1.msra.mxu0 %v1369
  %1408 = vmatprep.subr.mxu0 0.0
  %1409 = vmatpush1.msra.mxu0 %v1368
  %1410 = vmatprep.subr.mxu0 0.0
  %1411 = vmatpush1.msra.mxu0 %v1367
  %1412 = vmatprep.subr.mxu0 0.0
  %1413 = vmatpush2.msra.mxu0 0.0
  %1414 = vmatprep.subr.mxu0 0.0
  %1415 = vmatpush2.msra.mxu0 0.0
  %1416 = vmatprep.subr.mxu0 0.0
  %1417 = vmatpush2.msra.mxu0 0.0
  %1418 = vmatprep.subr.mxu0 0.0
  %1419 = vmatpush2.msra.mxu0 0.0
  %1420 = vmatprep.subr.mxu0 0.0
  %1421 = vmatpush2.msra.mxu0 0.0
  %1422 = vmatprep.subr.mxu0 0.0
  %1423 = vmatpush2.msra.mxu0 0.0
  %1424 = vmatprep.subr.mxu0 0.0
  %1425 = vmatpush2.msra.mxu0 0.0
  %1426 = vmatprep.subr.mxu0 0.0
  %1427 = vmatpush2.msra.mxu0 0.0
  %1428 = vmatprep.subr.mxu0 0.0
  %1429 = vmatpush2.msra.mxu0 0.0
  %1430 = vmatprep.subr.mxu0 0.0
  %1431 = vmatpush2.msra.mxu0 0.0
  %1432 = vmatprep.subr.mxu0 0.0
  %1433 = vmatpush2.msra.mxu0 0.0
  %1434 = vmatprep.subr.mxu0 0.0
  %1435 = vmatpush2.msra.mxu0 0.0
  %1436 = vmatprep.subr.mxu0 0.0
  %1437 = vmatpush2.msra.mxu0 0.0
  %1438 = vmatprep.subr.mxu0 0.0
  %1439 = vmatpush2.msra.mxu0 0.0
  %1440 = vmatprep.subr.mxu0 0.0
  %1441 = vmatpush2.msra.mxu0 0.0
  %1442 = vmatprep.subr.mxu0 0.0
  %1443 = vmatpush2.msra.mxu0 0.0
  %1444 = vmatprep.mubr.f32.mxu0 0.0
  %1445 = vmatmul.mubr.f32.gmra.mxu0 %v1378
  %v1446 = vpop.f32.mrf.mxu0
  %v1447 = vadd.f32 0.0, %v1446
  %v1448 = vpop.f32.mrf.mxu0
  %1449 = vdwg.mxu0
  %v1450 = vmul.f32 %v1447, %v1376
  %v1451 = vld [vmem:[%s8] sm:$0xff]
  %v1452 = vld [vmem:[%s8 + $0x8] sm:$0xff]
  %v1453 = vld [vmem:[%s8 + $0x10] sm:$0xff]
  %v1454 = vld [vmem:[%s8 + $0x18] sm:$0xff]
  %v1455 = vld [vmem:[%s8 + $0x20] sm:$0xff]
  %v1456 = vld [vmem:[%s8 + $0x28] sm:$0xff]
  %v1457 = vld [vmem:[%s8 + $0x30] sm:$0xff]
  %v1458 = vld [vmem:[%s8 + $0x38] sm:$0xff]
  %v1459 = vlaneseq
  %v1460 = vshrl.u32 %v1459, 7
  %v1461 = vsub.s32 0, %v1460
  %v1462 = vrot.slane %v51, %v1461
  %v1464 = vsel %vm53, %v1450, 0
  %1466 = vmatprep.subr.mxu0 0.0
  %1467 = vmatpush1.msra.mxu0 0.0
  %1468 = vmatprep.subr.mxu0 0.0
  %1469 = vmatpush1.msra.mxu0 0.0
  %1470 = vmatprep.subr.mxu0 0.0
  %1471 = vmatpush1.msra.mxu0 0.0
  %1472 = vmatprep.subr.mxu0 0.0
  %1473 = vmatpush1.msra.mxu0 0.0
  %1474 = vmatprep.subr.mxu0 0.0
  %1475 = vmatpush1.msra.mxu0 0.0
  %1476 = vmatprep.subr.mxu0 0.0
  %1477 = vmatpush1.msra.mxu0 0.0
  %1478 = vmatprep.subr.mxu0 0.0
  %1479 = vmatpush1.msra.mxu0 0.0
  %1480 = vmatprep.subr.mxu0 0.0
  %1481 = vmatpush1.msra.mxu0 0.0
  %1482 = vmatprep.subr.mxu0 0.0
  %1483 = vmatpush1.msra.mxu0 %v1458
  %1484 = vmatprep.subr.mxu0 0.0
  %1485 = vmatpush1.msra.mxu0 %v1457
  %1486 = vmatprep.subr.mxu0 0.0
  %1487 = vmatpush1.msra.mxu0 %v1456
  %1488 = vmatprep.subr.mxu0 0.0
  %1489 = vmatpush1.msra.mxu0 %v1455
  %1490 = vmatprep.subr.mxu0 0.0
  %1491 = vmatpush1.msra.mxu0 %v1454
  %1492 = vmatprep.subr.mxu0 0.0
  %1493 = vmatpush1.msra.mxu0 %v1453
  %1494 = vmatprep.subr.mxu0 0.0
  %1495 = vmatpush1.msra.mxu0 %v1452
  %1496 = vmatprep.subr.mxu0 0.0
  %1497 = vmatpush1.msra.mxu0 %v1451
  %1498 = vmatprep.subr.mxu0 0.0
  %1499 = vmatpush2.msra.mxu0 0.0
  %1500 = vmatprep.subr.mxu0 0.0
  %1501 = vmatpush2.msra.mxu0 0.0
  %1502 = vmatprep.subr.mxu0 0.0
  %1503 = vmatpush2.msra.mxu0 0.0
  %1504 = vmatprep.subr.mxu0 0.0
  %1505 = vmatpush2.msra.mxu0 0.0
  %1506 = vmatprep.subr.mxu0 0.0
  %1507 = vmatpush2.msra.mxu0 0.0
  %1508 = vmatprep.subr.mxu0 0.0
  %1509 = vmatpush2.msra.mxu0 0.0
  %1510 = vmatprep.subr.mxu0 0.0
  %1511 = vmatpush2.msra.mxu0 0.0
  %1512 = vmatprep.subr.mxu0 0.0
  %1513 = vmatpush2.msra.mxu0 0.0
  %1514 = vmatprep.subr.mxu0 0.0
  %1515 = vmatpush2.msra.mxu0 0.0
  %1516 = vmatprep.subr.mxu0 0.0
  %1517 = vmatpush2.msra.mxu0 0.0
  %1518 = vmatprep.subr.mxu0 0.0
  %1519 = vmatpush2.msra.mxu0 0.0
  %1520 = vmatprep.subr.mxu0 0.0
  %1521 = vmatpush2.msra.mxu0 0.0
  %1522 = vmatprep.subr.mxu0 0.0
  %1523 = vmatpush2.msra.mxu0 0.0
  %1524 = vmatprep.subr.mxu0 0.0
  %1525 = vmatpush2.msra.mxu0 0.0
  %1526 = vmatprep.subr.mxu0 0.0
  %1527 = vmatpush2.msra.mxu0 0.0
  %1528 = vmatprep.subr.mxu0 0.0
  %1529 = vmatpush2.msra.mxu0 0.0
  %1530 = vmatprep.mubr.f32.mxu0 0.0
  %1531 = vmatmul.mubr.f32.gmra.mxu0 %v1464
  %v1532 = vpop.f32.mrf.mxu0
  %v1533 = vadd.f32 %v1462, %v1532
  %v1534 = vpop.f32.mrf.mxu0
  %1535 = vdwg.mxu0
  %v1536 = vmax.f32 %v1533, 0.0
  %v1537 = vld [vmem:[%s9] sm:$0xff]
  %v1538 = vld [vmem:[%s9 + $0x8] sm:$0xff]
  %v1539 = vld [vmem:[%s9 + $0x10] sm:$0xff]
  %v1540 = vld [vmem:[%s9 + $0x18] sm:$0xff]
  %v1541 = vlaneseq
  %v1542 = vshrl.u32 %v1541, 7
  %v1543 = vsub.s32 0, %v1542
  %v1544 = vrot.slane %v52, %v1543
  %v1546 = vsel %vm181, %v1536, 0
  %1548 = vmatprep.subr.mxu0 0.0
  %1549 = vmatpush1.msra.mxu0 0.0
  %1550 = vmatprep.subr.mxu0 0.0
  %1551 = vmatpush1.msra.mxu0 0.0
  %1552 = vmatprep.subr.mxu0 0.0
  %1553 = vmatpush1.msra.mxu0 0.0
  %1554 = vmatprep.subr.mxu0 0.0
  %1555 = vmatpush1.msra.mxu0 0.0
  %1556 = vmatprep.subr.mxu0 0.0
  %1557 = vmatpush1.msra.mxu0 0.0
  %1558 = vmatprep.subr.mxu0 0.0
  %1559 = vmatpush1.msra.mxu0 0.0
  %1560 = vmatprep.subr.mxu0 0.0
  %1561 = vmatpush1.msra.mxu0 0.0
  %1562 = vmatprep.subr.mxu0 0.0
  %1563 = vmatpush1.msra.mxu0 0.0
  %1564 = vmatprep.subr.mxu0 0.0
  %1565 = vmatpush1.msra.mxu0 0.0
  %1566 = vmatprep.subr.mxu0 0.0
  %1567 = vmatpush1.msra.mxu0 0.0
  %1568 = vmatprep.subr.mxu0 0.0
  %1569 = vmatpush1.msra.mxu0 0.0
  %1570 = vmatprep.subr.mxu0 0.0
  %1571 = vmatpush1.msra.mxu0 0.0
  %1572 = vmatprep.subr.mxu0 0.0
  %1573 = vmatpush1.msra.mxu0 %v1540
  %1574 = vmatprep.subr.mxu0 0.0
  %1575 = vmatpush1.msra.mxu0 %v1539
  %1576 = vmatprep.subr.mxu0 0.0
  %1577 = vmatpush1.msra.mxu0 %v1538
  %1578 = vmatprep.subr.mxu0 0.0
  %1579 = vmatpush1.msra.mxu0 %v1537
  %1580 = vmatprep.subr.mxu0 0.0
  %1581 = vmatpush2.msra.mxu0 0.0
  %1582 = vmatprep.subr.mxu0 0.0
  %1583 = vmatpush2.msra.mxu0 0.0
  %1584 = vmatprep.subr.mxu0 0.0
  %1585 = vmatpush2.msra.mxu0 0.0
  %1586 = vmatprep.subr.mxu0 0.0
  %1587 = vmatpush2.msra.mxu0 0.0
  %1588 = vmatprep.subr.mxu0 0.0
  %1589 = vmatpush2.msra.mxu0 0.0
  %1590 = vmatprep.subr.mxu0 0.0
  %1591 = vmatpush2.msra.mxu0 0.0
  %1592 = vmatprep.subr.mxu0 0.0
  %1593 = vmatpush2.msra.mxu0 0.0
  %1594 = vmatprep.subr.mxu0 0.0
  %1595 = vmatpush2.msra.mxu0 0.0
  %1596 = vmatprep.subr.mxu0 0.0
  %1597 = vmatpush2.msra.mxu0 0.0
  %1598 = vmatprep.subr.mxu0 0.0
  %1599 = vmatpush2.msra.mxu0 0.0
  %1600 = vmatprep.subr.mxu0 0.0
  %1601 = vmatpush2.msra.mxu0 0.0
  %1602 = vmatprep.subr.mxu0 0.0
  %1603 = vmatpush2.msra.mxu0 0.0
  %1604 = vmatprep.subr.mxu0 0.0
  %1605 = vmatpush2.msra.mxu0 0.0
  %1606 = vmatprep.subr.mxu0 0.0
  %1607 = vmatpush2.msra.mxu0 0.0
  %1608 = vmatprep.subr.mxu0 0.0
  %1609 = vmatpush2.msra.mxu0 0.0
  %1610 = vmatprep.subr.mxu0 0.0
  %1611 = vmatpush2.msra.mxu0 0.0
  %1612 = vmatprep.mubr.f32.mxu0 0.0
  %1613 = vmatmul.mubr.f32.gmra.mxu0 %v1546
  %v1614 = vpop.f32.mrf.mxu0
  %v1615 = vadd.f32 %v1544, %v1614
  %v1616 = vpop.f32.mrf.mxu0
  %1617 = vdwg.mxu0
  %1618 = vst [vmem:[%s11] sm:$0x3] %v1615
  // Predicated region
  $region46: #{dagcn_bert_forward.1} parent=0 // pred_check
    _
  $region47: #{dagcn_bert_forward.1} parent=0 // pred_check_branch
    %1620 = sbr.rel (0) target = $region49
  $region48: #{dagcn_bert_forward.1} parent=0 // pred_region
    _
  $region49: #{dagcn_bert_forward.1} parent=0 // pred_fallthru
    _
  // Predicated region
  $region50: #{dagcn_bert_forward.1} parent=0 // pred_check
    _
  $region51: #{dagcn_bert_forward.1} parent=0 // pred_check_branch
    %1622 = sbr.rel (0) target = $region53
  $region52: #{dagcn_bert_forward.1} parent=0 // pred_region
    _
  $region53: #{dagcn_bert_forward.1} parent=0 // pred_fallthru
    _

</llo_original>
